<compile_context>
chip_gen: v7x
topology: tpu7x:2x2x1
jax: 0.10.0
libtpu: 0.0.40
codegen_flags: <defaults>
</compile_context>

<pallas_src>
import jax
import jax.numpy as jnp
import numpy as np
from jax.experimental import pallas as pl
from jax.experimental.pallas import tpu as pltpu


# ----------------------------------------------------------------------------
# Pallas kernels
# ----------------------------------------------------------------------------
def _gcn_fused_kernel(bf_ref, ba_ref, bah_ref, w_ref, bias_ref, alpha_ref,
                      x1_ref, x2_ref, x1h_ref, x2h_ref):
    # bf_ref : (S, TB, F)  bf16, node-major
    # ba_ref / bah_ref : (TB, S*S) f32 (flattened adjacency, row-major (s, t))
    # w_ref : (F, 2H) bf16, bias_ref / alpha_ref : (1, 2H) f32
    # outputs: X1 = [h_mv | h_unano], X2 = [c | h_ano]  each (TB, 2H) f32, per adjacency
    S = bf_ref.shape[0]
    H2 = w_ref.shape[1]
    H = H2 // 2
    w = w_ref[...]
    bias = bias_ref[...]
    alpha = alpha_ref[...]

    # Shared linear layer: one (TB, F) @ (F, 2H) MXU matmul per node slot (bf16 in,
    # f32 accumulate).  Computed once, reused for both adjacencies.
    seq = [jnp.dot(bf_ref[t], w, preferred_element_type=jnp.float32)
           for t in range(S)]
    TB = seq[0].shape[0]
    lane = jax.lax.broadcasted_iota(jnp.int32, (TB, H2), 1)

    def aggregate(ba):
        # A @ (X W) + b, PReLU, then in-kernel readout.  The 5x5 batched matmul is
        # unrolled into broadcast-FMAs on lane-dense (TB, 2H) slabs (pure VPU work).
        x1 = None
        ano = None
        c_acc = jnp.zeros((TB, H2), jnp.float32)
        for s in range(S):
            acc = jnp.zeros((TB, H2), jnp.float32)
            for t in range(S):
                idx = s * S + t
                acc = acc + ba[:, idx:idx + 1] * seq[t]
            out_s = acc + bias
            out_s = jnp.where(out_s >= 0.0, out_s, alpha * out_s)   # shared-param PReLU
            if s == S - 1:
                x1 = out_s                                          # [h_mv | h_unano]
            if s == S - 2:
                ano = out_s                                         # right half = h_ano
            if s < S - 1:
                c_acc = c_acc + out_s                               # avg-readout accum
        c_mean = c_acc * (1.0 / float(S - 1))
        x2 = jnp.where(lane < H, c_mean, ano)                       # [c | h_ano]
        return x1, x2

    x1, x2 = aggregate(ba_ref[...])
    x1h, x2h = aggregate(bah_ref[...])
    x1_ref[...] = x1
    x2_ref[...] = x2
    x1h_ref[...] = x1h
    x2h_ref[...] = x2h


def _heads_kernel(x1_ref, x2_ref, x2mi_ref, x1h_ref, x2h_ref, x2mih_ref,
                  x2r_ref, x2hr_ref, wb_ref, scores_ref, nce_ref):
    # Bilinear discriminators (context + patch, ba + ba_hat) and the NCE terms.
    # x* : (TB, 2H) f32, wb : (2H, 2H) block-diag f32.
    wb = wb_ref[...]
    H2 = wb.shape[0]
    H = H2 // 2
    x1 = x1_ref[...]
    x2 = x2_ref[...]
    x2mi = x2mi_ref[...]
    x1h = x1h_ref[...]
    x2h = x2h_ref[...]
    x2mih = x2mih_ref[...]
    x2r = x2r_ref[...]
    x2hr = x2hr_ref[...]

    TB = x1.shape[0]
    lane = jax.lax.broadcasted_iota(jnp.int32, (TB, H2), 1)
    left = lane < H

    def disc(x1v, x2v, x2miv):
        # m = [h_mv @ Wb_c | h_unano @ Wb_p] via one block-diagonal matmul.
        m = jnp.dot(x1v, wb, preferred_element_type=jnp.float32)
        p = m * x2v
        n = m * x2miv
        pos_c = jnp.sum(jnp.where(left, p, 0.0), axis=1, keepdims=True)
        neg_c = jnp.sum(jnp.where(left, n, 0.0), axis=1, keepdims=True)
        pos_p = jnp.sum(jnp.where(left, 0.0, p), axis=1, keepdims=True)
        neg_p = jnp.sum(jnp.where(left, 0.0, n), axis=1, keepdims=True)
        return pos_c, neg_c, pos_p, neg_p

    pc, nc, pp, np_ = disc(x1, x2, x2mi)
    pch, nch, pph, nph = disc(x1h, x2h, x2mih)
    scores_ref[...] = jnp.concatenate([pc, nc, pp, np_, pch, nch, pph, nph], axis=1)

    # --- NCE: only the consumed similarity entries (diag + roll-by-1 column). ---
    def norm_left(v):
        vl = jnp.where(left, v, 0.0)                       # keep only the c-half
        nn = jnp.maximum(jnp.sqrt(jnp.sum(vl * vl, axis=1, keepdims=True)), 1e-12)
        return vl / nn

    en = norm_left(x2)       # normalized subgraph embedding  (ba)
    enh = norm_left(x2h)     # normalized subgraph embedding  (ba_hat)
    enr = norm_left(x2r)     # roll-by-1 of en  (normalize commutes with roll)
    enhr = norm_left(x2hr)   # roll-by-1 of enh

    d1 = jnp.sum(en * enh, axis=1, keepdims=True)     # diag(sim_matrix_one)
    r1 = jnp.sum(en * enhr, axis=1, keepdims=True)    # sim_matrix_one[i, nega[i]]
    r2 = jnp.sum(en * enr, axis=1, keepdims=True)     # sim_matrix_two[i, nega[i]]
    r3 = jnp.sum(enh * enhr, axis=1, keepdims=True)   # sim_matrix_three[i, nega[i]]
    nce_ref[...] = -jnp.log(jnp.exp(d1) / (jnp.exp(r1) + jnp.exp(r2) + jnp.exp(r3)))


# ----------------------------------------------------------------------------
# Pallas wrappers
# ----------------------------------------------------------------------------
def _pick_tb(B):
    # batch tile: multiple of 16 (bf16 sublane packing) that divides B, else whole B.
    for tb in (512, 256, 128, 64, 32, 16):
        if B % tb == 0:
            return tb
    return B


_COMPILER_PARAMS = pltpu.CompilerParams(
    dimension_semantics=("parallel",),          # megacore-shard the batch axis on v7x
    vmem_limit_bytes=32 * 1024 * 1024,          # safe on v5e/v6e/v7x (64 MiB physical)
)


def gcn_fused(bf_nm, ba_flat, bah_flat, w, bias_vec, alpha_vec):
    S, B, F = bf_nm.shape
    H2 = w.shape[1]
    TB = _pick_tb(B)
    out_sd = jax.ShapeDtypeStruct((B, H2), jnp.float32)
    vec_spec = pl.BlockSpec((1, H2), lambda i: (0, 0))
    out_spec = pl.BlockSpec((TB, H2), lambda i: (i, 0))
    return pl.pallas_call(
        _gcn_fused_kernel,
        out_shape=(out_sd, out_sd, out_sd, out_sd),
        grid=(B // TB,),
        in_specs=[
            pl.BlockSpec((S, TB, F), lambda i: (0, i, 0)),
            pl.BlockSpec((TB, S * S), lambda i: (i, 0)),
            pl.BlockSpec((TB, S * S), lambda i: (i, 0)),
            pl.BlockSpec((F, H2), lambda i: (0, 0)),
            vec_spec,
            vec_spec,
        ],
        out_specs=(out_spec, out_spec, out_spec, out_spec),
        compiler_params=_COMPILER_PARAMS,
    )(bf_nm, ba_flat, bah_flat, w, bias_vec, alpha_vec)


def heads_fused(x1, x2, x2mi, x1h, x2h, x2mih, x2r, x2hr, wb):
    B, H2 = x1.shape
    TB = _pick_tb(B)
    mat_spec = pl.BlockSpec((TB, H2), lambda i: (i, 0))
    return pl.pallas_call(
        _heads_kernel,
        out_shape=(jax.ShapeDtypeStruct((B, 8), jnp.float32),
                   jax.ShapeDtypeStruct((B, 1), jnp.float32)),
        grid=(B // TB,),
        in_specs=[mat_spec] * 8 + [pl.BlockSpec((H2, H2), lambda i: (0, 0))],
        out_specs=(pl.BlockSpec((TB, 8), lambda i: (i, 0)),
                   pl.BlockSpec((TB, 1), lambda i: (i, 0))),
        compiler_params=_COMPILER_PARAMS,
    )(x1, x2, x2mi, x1h, x2h, x2mih, x2r, x2hr, wb)


# ----------------------------------------------------------------------------
# Parameters
# ----------------------------------------------------------------------------
def xavier_uniform(key, shape, fan_in, fan_out):
    bound = float(np.sqrt(6.0 / (fan_in + fan_out)))
    return jax.random.uniform(key, shape, jnp.float32, -bound, bound)


def init_params(key, n_in, n_h):
    ks = jax.random.split(key, 4)
    Wc = xavier_uniform(ks[0], (n_in, n_h), n_in, n_h)
    Wp = xavier_uniform(ks[1], (n_in, n_h), n_in, n_h)
    Wb_c = xavier_uniform(ks[2], (n_h, n_h), n_h, n_h)
    Wb_p = xavier_uniform(ks[3], (n_h, n_h), n_h, n_h)
    ac = jnp.float32(0.25)                       # PReLU default init
    ap = jnp.float32(0.25)
    bc = jnp.zeros((1, n_h), jnp.float32)
    bp = jnp.zeros((1, n_h), jnp.float32)
    # fused tensors used by the kernels
    W = jnp.concatenate([Wc, Wp], axis=1).astype(jnp.bfloat16)        # (F, 2H)
    bias = jnp.concatenate([bc, bp], axis=1)                          # (1, 2H)
    alpha = jnp.concatenate([jnp.full((1, n_h), ac, jnp.float32),
                             jnp.full((1, n_h), ap, jnp.float32)], axis=1)
    Wb = jnp.zeros((2 * n_h, 2 * n_h), jnp.float32)
    Wb = Wb.at[:n_h, :n_h].set(Wb_c)
    Wb = Wb.at[n_h:, n_h:].set(Wb_p)
    return dict(W=W, bias=bias, alpha=alpha, Wb=Wb,
                bb_c=jnp.float32(0.0), bb_p=jnp.float32(0.0),
                # raw pieces kept only for the pure-JAX reference check
                Wc=Wc, Wp=Wp, bc=bc, bp=bp, ac=ac, ap=ap, Wb_c=Wb_c, Wb_p=Wb_p)


# ----------------------------------------------------------------------------
# GRADATE forward
# ----------------------------------------------------------------------------
def bce_with_logits(x, y, pos_weight=1.0):
    # torch.nn.BCEWithLogitsLoss(reduction='none', pos_weight=[1])
    return -(pos_weight * y * jax.nn.log_sigmoid(x) + (1.0 - y) * jax.nn.log_sigmoid(-x))


def gradate_forward(bf_nm, ba_flat, bah_flat, params, alpha=0.1, beta=0.1):
    B = ba_flat.shape[0]

    # fused GCN (both branches, both adjacencies) with in-kernel readout
    X1, X2, X1h, X2h = gcn_fused(bf_nm, ba_flat, bah_flat,
                                 params['W'], params['bias'], params['alpha'])

    # negative-sample shift (negsamp_round = 1; wrap element is the second-to-last
    # row, exactly as in the PyTorch reference: cat(c[-2:-1], c[:-1]))
    def shift(v):
        return jnp.concatenate([v[-2:-1, :], v[:-1, :]], axis=0)

    scores, nce_rows = heads_fused(
        X1, X2, shift(X2), X1h, X2h, shift(X2h),
        jnp.roll(X2, 1, axis=0), jnp.roll(X2h, 1, axis=0), params['Wb'])

    bb_c, bb_p = params['bb_c'], params['bb_p']
    l1 = jnp.concatenate([scores[:, 0], scores[:, 1]]) + bb_c     # context, ba
    l2 = jnp.concatenate([scores[:, 2], scores[:, 3]]) + bb_p     # patch,   ba
    l1h = jnp.concatenate([scores[:, 4], scores[:, 5]]) + bb_c    # context, ba_hat
    l2h = jnp.concatenate([scores[:, 6], scores[:, 7]]) + bb_p    # patch,   ba_hat

    lbl = jnp.concatenate([jnp.ones((B,), jnp.float32), jnp.zeros((B,), jnp.float32)])

    logits_1 = jax.nn.sigmoid(l1)
    logits_2 = jax.nn.sigmoid(l2)
    logits_1_hat = jax.nn.sigmoid(l1h)
    logits_2_hat = jax.nn.sigmoid(l2h)

    nce_loss = jnp.mean(nce_rows)

    # NOTE: the reference applies BCEWithLogits to already-sigmoided logits -- reproduced.
    loss_1 = jnp.mean(bce_with_logits(logits_1, lbl))
    loss_1_hat = jnp.mean(bce_with_logits(logits_1_hat, lbl))
    loss_2 = jnp.mean(bce_with_logits(logits_2, lbl))
    loss_2_hat = jnp.mean(bce_with_logits(logits_2_hat, lbl))

    loss_1 = alpha * loss_1 + (1 - alpha) * loss_1_hat
    loss_2 = alpha * loss_2 + (1 - alpha) * loss_2_hat
    loss = beta * loss_1 + (1 - beta) * loss_2 + 0.1 * nce_loss

    # anomaly scores (reference re-applies sigmoid inside no_grad -- reproduced)
    g1 = jax.nn.sigmoid(logits_1)
    g2 = jax.nn.sigmoid(logits_2)
    g1h = jax.nn.sigmoid(logits_1_hat)
    g2h = jax.nn.sigmoid(logits_2_hat)
    a1 = -(g1[:B] - jnp.mean(g1[B:].reshape(B, 1), axis=1))
    a1h = -(g1h[:B] - jnp.mean(g1h[B:].reshape(B, 1), axis=1))
    a2 = -(g2[:B] - jnp.mean(g2[B:].reshape(B, 1), axis=1))
    a2h = -(g2h[:B] - jnp.mean(g2h[B:].reshape(B, 1), axis=1))
    ano_score = beta * (alpha * a1 + (1 - alpha) * a1h) + \
                (1 - beta) * (alpha * a2 + (1 - alpha) * a2h)
    return loss, ano_score


# ----------------------------------------------------------------------------
# Pure-JAX reference (mirrors the PyTorch module) for a correctness check
# ----------------------------------------------------------------------------
def reference_forward(bf_nm, ba_flat, bah_flat, params, alpha=0.1, beta=0.1):
    S, B, F = bf_nm.shape
    bf = jnp.transpose(bf_nm, (1, 0, 2))                 # (B, S, F) bf16
    ba = ba_flat.reshape(B, S, S)
    ba_hat = bah_flat.reshape(B, S, S)

    def gcn(adj, Wx, bx, ax):
        seq = jnp.einsum('bsf,fh->bsh', bf, Wx.astype(jnp.bfloat16),
                         preferred_element_type=jnp.float32)
        out = jnp.einsum('bst,bth->bsh', adj, seq,
                         preferred_element_type=jnp.float32) + bx
        return jnp.where(out >= 0.0, out, ax * out)

    def bilinear(a1, a2, Wx, bx):
        return jnp.sum((a1 @ Wx) * a2, axis=1) + bx

    def run(adj):
        h1 = gcn(adj, params['Wc'], params['bc'], params['ac'])
        h2 = gcn(adj, params['Wp'], params['bp'], params['ap'])
        c = jnp.mean(h1[:, :-1, :], axis=1)
        h_mv = h1[:, -1, :]
        h_unano = h2[:, -1, :]
        h_ano = h2[:, -2, :]
        c_mi = jnp.concatenate([c[-2:-1], c[:-1]], axis=0)
        h_mi = jnp.concatenate([h_ano[-2:-1], h_ano[:-1]], axis=0)
        r1 = jnp.concatenate([bilinear(h_mv, c, params['Wb_c'], params['bb_c']),
                              bilinear(h_mv, c_mi, params['Wb_c'], params['bb_c'])])
        r2 = jnp.concatenate([bilinear(h_unano, h_ano, params['Wb_p'], params['bb_p']),
                              bilinear(h_unano, h_mi, params['Wb_p'], params['bb_p'])])
        return r1, r2, c

    l1, l2, emb = run(ba)
    l1h, l2h, emb_h = run(ba_hat)

    logits_1 = jax.nn.sigmoid(l1)
    logits_2 = jax.nn.sigmoid(l2)
    logits_1_hat = jax.nn.sigmoid(l1h)
    logits_2_hat = jax.nn.sigmoid(l2h)

    en = emb / jnp.maximum(jnp.linalg.norm(emb, axis=1, keepdims=True), 1e-12)
    enh = emb_h / jnp.maximum(jnp.linalg.norm(emb_h, axis=1, keepdims=True), 1e-12)
    s1, s2, s3 = en @ enh.T, en @ en.T, enh @ enh.T
    nega = jnp.concatenate([jnp.array([B - 1], jnp.int32),
                            jnp.arange(0, B - 1, dtype=jnp.int32)])
    row_sum = jnp.diagonal((jnp.exp(s1) + jnp.exp(s2) + jnp.exp(s3))[:, nega])
    nce = jnp.mean(-jnp.log(jnp.exp(jnp.diagonal(s1)) / row_sum))

    lbl = jnp.concatenate([jnp.ones((B,)), jnp.zeros((B,))])
    loss_1 = alpha * jnp.mean(bce_with_logits(logits_1, lbl)) + \
             (1 - alpha) * jnp.mean(bce_with_logits(logits_1_hat, lbl))
    loss_2 = alpha * jnp.mean(bce_with_logits(logits_2, lbl)) + \
             (1 - alpha) * jnp.mean(bce_with_logits(logits_2_hat, lbl))
    loss = beta * loss_1 + (1 - beta) * loss_2 + 0.1 * nce

    g1, g2 = jax.nn.sigmoid(logits_1), jax.nn.sigmoid(logits_2)
    g1h, g2h = jax.nn.sigmoid(logits_1_hat), jax.nn.sigmoid(logits_2_hat)
    a1, a1h = -(g1[:B] - g1[B:]), -(g1h[:B] - g1h[B:])
    a2, a2h = -(g2[:B] - g2[B:]), -(g2h[:B] - g2h[B:])
    ano = beta * (alpha * a1 + (1 - alpha) * a1h) + \
          (1 - beta) * (alpha * a2 + (1 - alpha) * a2h)
    return loss, ano


# ----------------------------------------------------------------------------
# Deterministic graph preprocessing glue (replaces dgl / scipy / random parts)
# ----------------------------------------------------------------------------
def normalize_adj_dense(a):
    rowsum = a.sum(axis=1)
    d_inv_sqrt = np.where(rowsum > 0, np.power(rowsum, -0.5, where=rowsum > 0), 0.0)
    return (a * d_inv_sqrt[None, :]).T * d_inv_sqrt[None, :]


def build_batches(x_np, adj_np, adj_hat_np, subgraph_size):
    nb_nodes, ft_size = x_np.shape
    cur_batch_size = (nb_nodes // subgraph_size) * subgraph_size
    # TODO(synk): dgl.sampling.random_walk has no Pallas/JAX equivalent here;
    # deterministic wrap-around windows stand in for the random-walk subgraphs.
    subgraphs = [[(i + k) % nb_nodes for k in range(subgraph_size)]
                 for i in range(cur_batch_size)]
    S = subgraph_size + 1
    B = cur_batch_size
    ba = np.zeros((B, S, S), np.float32)
    ba_hat = np.zeros((B, S, S), np.float32)
    bf = np.zeros((B, S, ft_size), np.float32)
    for i, sub in enumerate(subgraphs):
        cur_adj = adj_np[np.ix_(sub, sub)]
        cur_adj_hat = adj_hat_np[np.ix_(sub, sub)]
        cur_feat = x_np[sub]
        a = np.zeros((S, S), np.float32)
        a[:subgraph_size, :subgraph_size] = cur_adj
        a[-1, -1] = 1.0
        ba[i] = a
        ah = np.zeros((S, S), np.float32)
        ah[:subgraph_size, :subgraph_size] = cur_adj_hat
        ah[-1, -1] = 1.0
        ba_hat[i] = ah
        # bf = cat(feat[:-1], zero_row, feat[-1:])
        bf[i, :subgraph_size - 1] = cur_feat[:-1]
        bf[i, subgraph_size - 1] = 0.0
        bf[i, subgraph_size] = cur_feat[-1]
    # node-major bf16 features and lane-flattened adjacencies for the kernels
    bf_nm = jnp.asarray(np.transpose(bf, (1, 0, 2)), dtype=jnp.bfloat16)   # (S, B, F)
    ba_flat = jnp.asarray(ba.reshape(B, S * S))
    bah_flat = jnp.asarray(ba_hat.reshape(B, S * S))
    return bf_nm, ba_flat, bah_flat


if __name__ == "__main__":
    key = jax.random.PRNGKey(0)
    k_x, k_adj, k_aug, k_params = jax.random.split(key, 4)

    nb_nodes, n_in, n_h, subgraph_size = 8, 32, 64, 4

    # deterministic node features and adjacency
    x_np = np.asarray(jax.random.normal(k_x, (nb_nodes, n_in), jnp.float32))
    a = np.asarray(jax.random.bernoulli(k_adj, 0.4, (nb_nodes, nb_nodes)), np.float32)
    adj_raw = np.clip(a + a.T, 0.0, 1.0)
    np.fill_diagonal(adj_raw, 0.0)
    # TODO(synk): aug_random_edge uses python `random` + scipy sparse; deterministic
    # edge perturbation stands in for it.
    p = np.asarray(jax.random.bernoulli(k_aug, 0.1, (nb_nodes, nb_nodes)), np.float32)
    adj_hat_raw = np.clip(np.abs(adj_raw - np.clip(p + p.T, 0.0, 1.0)), 0.0, 1.0)

    adj_n = normalize_adj_dense(adj_raw) + np.eye(nb_nodes, dtype=np.float32)
    adj_hat_n = normalize_adj_dense(adj_hat_raw) + np.eye(nb_nodes, dtype=np.float32)

    bf_nm, ba_flat, bah_flat = build_batches(x_np, adj_n, adj_hat_n, subgraph_size)
    params = init_params(k_params, n_in, n_h)

    fwd = jax.jit(gradate_forward)
    loss, ano_score = fwd(bf_nm, ba_flat, bah_flat, params)
    loss = jax.block_until_ready(loss)
    ano_score = jax.block_until_ready(ano_score)

    # correctness check against the pure-JAX reference of the same forward pass
    ref_loss, ref_ano = reference_forward(bf_nm, ba_flat, bah_flat, params)
    np.testing.assert_allclose(float(loss), float(ref_loss), rtol=1e-2, atol=1e-2)
    np.testing.assert_allclose(np.asarray(ano_score), np.asarray(ref_ano),
                               rtol=1e-2, atol=1e-2)
    assert np.isfinite(float(loss))
    assert ano_score.shape == (ba_flat.shape[0],)
    print("KERNEL_OK")
</pallas_src>

<mosaic_0001>
module attributes {stable_mosaic.version = 11 : i64} {
  func.func @_gcn_fused_kernel(%arg0: i32, %arg1: memref<5x8x32xbf16, #tpu.memory_space<vmem>>, %arg2: memref<8x25xf32, #tpu.memory_space<vmem>>, %arg3: memref<8x25xf32, #tpu.memory_space<vmem>>, %arg4: memref<32x128xbf16, #tpu.memory_space<vmem>>, %arg5: memref<1x128xf32, #tpu.memory_space<vmem>>, %arg6: memref<1x128xf32, #tpu.memory_space<vmem>>, %arg7: memref<8x128xf32, #tpu.memory_space<vmem>>, %arg8: memref<8x128xf32, #tpu.memory_space<vmem>>, %arg9: memref<8x128xf32, #tpu.memory_space<vmem>>, %arg10: memref<8x128xf32, #tpu.memory_space<vmem>>) attributes {dimension_semantics = [#tpu.dimension_semantics<parallel>], iteration_bounds = array<i64: 1>, scalar_prefetch = 0 : i64, scratch_operands = 0 : i64, tpu.core_type = #tpu.core_type<tc>, window_params = [{transform_indices = @transform_0, window_bounds = array<i64: 5, 8, 32>}, {transform_indices = @transform_1, window_bounds = array<i64: 8, 25>}, {transform_indices = @transform_2, window_bounds = array<i64: 8, 25>}, {pipeline_mode = #tpu.pipeline_mode<synchronous>, transform_indices = @transform_3, window_bounds = array<i64: 32, 128>}, {pipeline_mode = #tpu.pipeline_mode<synchronous>, transform_indices = @transform_4, window_bounds = array<i64: 1, 128>}, {pipeline_mode = #tpu.pipeline_mode<synchronous>, transform_indices = @transform_5, window_bounds = array<i64: 1, 128>}, {transform_indices = @transform_6, window_bounds = array<i64: 8, 128>}, {transform_indices = @transform_7, window_bounds = array<i64: 8, 128>}, {transform_indices = @transform_8, window_bounds = array<i64: 8, 128>}, {transform_indices = @transform_9, window_bounds = array<i64: 8, 128>}]} {
    %c0 = arith.constant 0 : index
    %c0_0 = arith.constant 0 : index
    %0 = vector.load %arg4[%c0, %c0_0] : memref<32x128xbf16, #tpu.memory_space<vmem>>, vector<32x128xbf16>
    %c0_1 = arith.constant 0 : index
    %c0_2 = arith.constant 0 : index
    %1 = vector.load %arg5[%c0_1, %c0_2] : memref<1x128xf32, #tpu.memory_space<vmem>>, vector<1x128xf32>
    %c0_3 = arith.constant 0 : index
    %c0_4 = arith.constant 0 : index
    %2 = vector.load %arg6[%c0_3, %c0_4] : memref<1x128xf32, #tpu.memory_space<vmem>>, vector<1x128xf32>
    %c0_5 = arith.constant 0 : index
    %c0_6 = arith.constant 0 : index
    %c0_7 = arith.constant 0 : index
    %3 = vector.load %arg1[%c0_5, %c0_6, %c0_7] : memref<5x8x32xbf16, #tpu.memory_space<vmem>>, vector<1x8x32xbf16>
    %4 = vector.shape_cast %3 : vector<1x8x32xbf16> to vector<8x32xbf16>
    %cst = arith.constant dense<0.000000e+00> : vector<8x128xf32>
    %5 = tpu.matmul %4, %0, %cst {dimension_numbers = #tpu.dot_dimension_numbers<[1], [0], [0], [1], [0, 0, 1, 1], [], []>} : vector<8x32xbf16>, vector<32x128xbf16>, vector<8x128xf32> -> vector<8x128xf32>
    %c1 = arith.constant 1 : index
    %c0_8 = arith.constant 0 : index
    %c0_9 = arith.constant 0 : index
    %6 = vector.load %arg1[%c1, %c0_8, %c0_9] : memref<5x8x32xbf16, #tpu.memory_space<vmem>>, vector<1x8x32xbf16>
    %7 = vector.shape_cast %6 : vector<1x8x32xbf16> to vector<8x32xbf16>
    %cst_10 = arith.constant dense<0.000000e+00> : vector<8x128xf32>
    %8 = tpu.matmul %7, %0, %cst_10 {dimension_numbers = #tpu.dot_dimension_numbers<[1], [0], [0], [1], [0, 0, 1, 1], [], []>} : vector<8x32xbf16>, vector<32x128xbf16>, vector<8x128xf32> -> vector<8x128xf32>
    %c2 = arith.constant 2 : index
    %c0_11 = arith.constant 0 : index
    %c0_12 = arith.constant 0 : index
    %9 = vector.load %arg1[%c2, %c0_11, %c0_12] : memref<5x8x32xbf16, #tpu.memory_space<vmem>>, vector<1x8x32xbf16>
    %10 = vector.shape_cast %9 : vector<1x8x32xbf16> to vector<8x32xbf16>
    %cst_13 = arith.constant dense<0.000000e+00> : vector<8x128xf32>
    %11 = tpu.matmul %10, %0, %cst_13 {dimension_numbers = #tpu.dot_dimension_numbers<[1], [0], [0], [1], [0, 0, 1, 1], [], []>} : vector<8x32xbf16>, vector<32x128xbf16>, vector<8x128xf32> -> vector<8x128xf32>
    %c3 = arith.constant 3 : index
    %c0_14 = arith.constant 0 : index
    %c0_15 = arith.constant 0 : index
    %12 = vector.load %arg1[%c3, %c0_14, %c0_15] : memref<5x8x32xbf16, #tpu.memory_space<vmem>>, vector<1x8x32xbf16>
    %13 = vector.shape_cast %12 : vector<1x8x32xbf16> to vector<8x32xbf16>
    %cst_16 = arith.constant dense<0.000000e+00> : vector<8x128xf32>
    %14 = tpu.matmul %13, %0, %cst_16 {dimension_numbers = #tpu.dot_dimension_numbers<[1], [0], [0], [1], [0, 0, 1, 1], [], []>} : vector<8x32xbf16>, vector<32x128xbf16>, vector<8x128xf32> -> vector<8x128xf32>
    %c4 = arith.constant 4 : index
    %c0_17 = arith.constant 0 : index
    %c0_18 = arith.constant 0 : index
    %15 = vector.load %arg1[%c4, %c0_17, %c0_18] : memref<5x8x32xbf16, #tpu.memory_space<vmem>>, vector<1x8x32xbf16>
    %16 = vector.shape_cast %15 : vector<1x8x32xbf16> to vector<8x32xbf16>
    %cst_19 = arith.constant dense<0.000000e+00> : vector<8x128xf32>
    %17 = tpu.matmul %16, %0, %cst_19 {dimension_numbers = #tpu.dot_dimension_numbers<[1], [0], [0], [1], [0, 0, 1, 1], [], []>} : vector<8x32xbf16>, vector<32x128xbf16>, vector<8x128xf32> -> vector<8x128xf32>
    %18 = tpu.iota {dimensions = array<i32: 1>} : vector<8x128xi32>
    %c0_20 = arith.constant 0 : index
    %c0_21 = arith.constant 0 : index
    %19 = vector.load %arg2[%c0_20, %c0_21] : memref<8x25xf32, #tpu.memory_space<vmem>>, vector<8x25xf32>
    %cst_22 = arith.constant 0.000000e+00 : f32
    %20 = vector.broadcast %cst_22 : f32 to vector<8x128xf32>
    %cst_23 = arith.constant 0.000000e+00 : f32
    %21 = vector.broadcast %cst_23 : f32 to vector<8x128xf32>
    %22 = vector.extract_strided_slice %19 {offsets = [0, 0], sizes = [8, 1], strides = [1, 1]} : vector<8x25xf32> to vector<8x1xf32>
    %23 = vector.broadcast %22 : vector<8x1xf32> to vector<8x128xf32>
    %24 = arith.mulf %23, %5 : vector<8x128xf32>
    %25 = arith.addf %21, %24 : vector<8x128xf32>
    %26 = vector.extract_strided_slice %19 {offsets = [0, 1], sizes = [8, 1], strides = [1, 1]} : vector<8x25xf32> to vector<8x1xf32>
    %27 = vector.broadcast %26 : vector<8x1xf32> to vector<8x128xf32>
    %28 = arith.mulf %27, %8 : vector<8x128xf32>
    %29 = arith.addf %25, %28 : vector<8x128xf32>
    %30 = vector.extract_strided_slice %19 {offsets = [0, 2], sizes = [8, 1], strides = [1, 1]} : vector<8x25xf32> to vector<8x1xf32>
    %31 = vector.broadcast %30 : vector<8x1xf32> to vector<8x128xf32>
    %32 = arith.mulf %31, %11 : vector<8x128xf32>
    %33 = arith.addf %29, %32 : vector<8x128xf32>
    %34 = vector.extract_strided_slice %19 {offsets = [0, 3], sizes = [8, 1], strides = [1, 1]} : vector<8x25xf32> to vector<8x1xf32>
    %35 = vector.broadcast %34 : vector<8x1xf32> to vector<8x128xf32>
    %36 = arith.mulf %35, %14 : vector<8x128xf32>
    %37 = arith.addf %33, %36 : vector<8x128xf32>
    %38 = vector.extract_strided_slice %19 {offsets = [0, 4], sizes = [8, 1], strides = [1, 1]} : vector<8x25xf32> to vector<8x1xf32>
    %39 = vector.broadcast %38 : vector<8x1xf32> to vector<8x128xf32>
    %40 = arith.mulf %39, %17 : vector<8x128xf32>
    %41 = arith.addf %37, %40 : vector<8x128xf32>
    %42 = vector.broadcast %1 : vector<1x128xf32> to vector<8x128xf32>
    %43 = arith.addf %41, %42 : vector<8x128xf32>
    %cst_24 = arith.constant 0.000000e+00 : f32
    %44 = vector.broadcast %cst_24 : f32 to vector<8x128xf32>
    %45 = arith.cmpf oge, %43, %44 : vector<8x128xf32>
    %46 = vector.broadcast %2 : vector<1x128xf32> to vector<8x128xf32>
    %47 = arith.mulf %46, %43 : vector<8x128xf32>
    %48 = arith.select %45, %43, %47 : vector<8x128xi1>, vector<8x128xf32>
    %49 = arith.addf %20, %48 : vector<8x128xf32>
    %cst_25 = arith.constant 0.000000e+00 : f32
    %50 = vector.broadcast %cst_25 : f32 to vector<8x128xf32>
    %51 = vector.extract_strided_slice %19 {offsets = [0, 5], sizes = [8, 1], strides = [1, 1]} : vector<8x25xf32> to vector<8x1xf32>
    %52 = vector.broadcast %51 : vector<8x1xf32> to vector<8x128xf32>
    %53 = arith.mulf %52, %5 : vector<8x128xf32>
    %54 = arith.addf %50, %53 : vector<8x128xf32>
    %55 = vector.extract_strided_slice %19 {offsets = [0, 6], sizes = [8, 1], strides = [1, 1]} : vector<8x25xf32> to vector<8x1xf32>
    %56 = vector.broadcast %55 : vector<8x1xf32> to vector<8x128xf32>
    %57 = arith.mulf %56, %8 : vector<8x128xf32>
    %58 = arith.addf %54, %57 : vector<8x128xf32>
    %59 = vector.extract_strided_slice %19 {offsets = [0, 7], sizes = [8, 1], strides = [1, 1]} : vector<8x25xf32> to vector<8x1xf32>
    %60 = vector.broadcast %59 : vector<8x1xf32> to vector<8x128xf32>
    %61 = arith.mulf %60, %11 : vector<8x128xf32>
    %62 = arith.addf %58, %61 : vector<8x128xf32>
    %63 = vector.extract_strided_slice %19 {offsets = [0, 8], sizes = [8, 1], strides = [1, 1]} : vector<8x25xf32> to vector<8x1xf32>
    %64 = vector.broadcast %63 : vector<8x1xf32> to vector<8x128xf32>
    %65 = arith.mulf %64, %14 : vector<8x128xf32>
    %66 = arith.addf %62, %65 : vector<8x128xf32>
    %67 = vector.extract_strided_slice %19 {offsets = [0, 9], sizes = [8, 1], strides = [1, 1]} : vector<8x25xf32> to vector<8x1xf32>
    %68 = vector.broadcast %67 : vector<8x1xf32> to vector<8x128xf32>
    %69 = arith.mulf %68, %17 : vector<8x128xf32>
    %70 = arith.addf %66, %69 : vector<8x128xf32>
    %71 = vector.broadcast %1 : vector<1x128xf32> to vector<8x128xf32>
    %72 = arith.addf %70, %71 : vector<8x128xf32>
    %cst_26 = arith.constant 0.000000e+00 : f32
    %73 = vector.broadcast %cst_26 : f32 to vector<8x128xf32>
    %74 = arith.cmpf oge, %72, %73 : vector<8x128xf32>
    %75 = vector.broadcast %2 : vector<1x128xf32> to vector<8x128xf32>
    %76 = arith.mulf %75, %72 : vector<8x128xf32>
    %77 = arith.select %74, %72, %76 : vector<8x128xi1>, vector<8x128xf32>
    %78 = arith.addf %49, %77 : vector<8x128xf32>
    %cst_27 = arith.constant 0.000000e+00 : f32
    %79 = vector.broadcast %cst_27 : f32 to vector<8x128xf32>
    %80 = vector.extract_strided_slice %19 {offsets = [0, 10], sizes = [8, 1], strides = [1, 1]} : vector<8x25xf32> to vector<8x1xf32>
    %81 = vector.broadcast %80 : vector<8x1xf32> to vector<8x128xf32>
    %82 = arith.mulf %81, %5 : vector<8x128xf32>
    %83 = arith.addf %79, %82 : vector<8x128xf32>
    %84 = vector.extract_strided_slice %19 {offsets = [0, 11], sizes = [8, 1], strides = [1, 1]} : vector<8x25xf32> to vector<8x1xf32>
    %85 = vector.broadcast %84 : vector<8x1xf32> to vector<8x128xf32>
    %86 = arith.mulf %85, %8 : vector<8x128xf32>
    %87 = arith.addf %83, %86 : vector<8x128xf32>
    %88 = vector.extract_strided_slice %19 {offsets = [0, 12], sizes = [8, 1], strides = [1, 1]} : vector<8x25xf32> to vector<8x1xf32>
    %89 = vector.broadcast %88 : vector<8x1xf32> to vector<8x128xf32>
    %90 = arith.mulf %89, %11 : vector<8x128xf32>
    %91 = arith.addf %87, %90 : vector<8x128xf32>
    %92 = vector.extract_strided_slice %19 {offsets = [0, 13], sizes = [8, 1], strides = [1, 1]} : vector<8x25xf32> to vector<8x1xf32>
    %93 = vector.broadcast %92 : vector<8x1xf32> to vector<8x128xf32>
    %94 = arith.mulf %93, %14 : vector<8x128xf32>
    %95 = arith.addf %91, %94 : vector<8x128xf32>
    %96 = vector.extract_strided_slice %19 {offsets = [0, 14], sizes = [8, 1], strides = [1, 1]} : vector<8x25xf32> to vector<8x1xf32>
    %97 = vector.broadcast %96 : vector<8x1xf32> to vector<8x128xf32>
    %98 = arith.mulf %97, %17 : vector<8x128xf32>
    %99 = arith.addf %95, %98 : vector<8x128xf32>
    %100 = vector.broadcast %1 : vector<1x128xf32> to vector<8x128xf32>
    %101 = arith.addf %99, %100 : vector<8x128xf32>
    %cst_28 = arith.constant 0.000000e+00 : f32
    %102 = vector.broadcast %cst_28 : f32 to vector<8x128xf32>
    %103 = arith.cmpf oge, %101, %102 : vector<8x128xf32>
    %104 = vector.broadcast %2 : vector<1x128xf32> to vector<8x128xf32>
    %105 = arith.mulf %104, %101 : vector<8x128xf32>
    %106 = arith.select %103, %101, %105 : vector<8x128xi1>, vector<8x128xf32>
    %107 = arith.addf %78, %106 : vector<8x128xf32>
    %cst_29 = arith.constant 0.000000e+00 : f32
    %108 = vector.broadcast %cst_29 : f32 to vector<8x128xf32>
    %109 = vector.extract_strided_slice %19 {offsets = [0, 15], sizes = [8, 1], strides = [1, 1]} : vector<8x25xf32> to vector<8x1xf32>
    %110 = vector.broadcast %109 : vector<8x1xf32> to vector<8x128xf32>
    %111 = arith.mulf %110, %5 : vector<8x128xf32>
    %112 = arith.addf %108, %111 : vector<8x128xf32>
    %113 = vector.extract_strided_slice %19 {offsets = [0, 16], sizes = [8, 1], strides = [1, 1]} : vector<8x25xf32> to vector<8x1xf32>
    %114 = vector.broadcast %113 : vector<8x1xf32> to vector<8x128xf32>
    %115 = arith.mulf %114, %8 : vector<8x128xf32>
    %116 = arith.addf %112, %115 : vector<8x128xf32>
    %117 = vector.extract_strided_slice %19 {offsets = [0, 17], sizes = [8, 1], strides = [1, 1]} : vector<8x25xf32> to vector<8x1xf32>
    %118 = vector.broadcast %117 : vector<8x1xf32> to vector<8x128xf32>
    %119 = arith.mulf %118, %11 : vector<8x128xf32>
    %120 = arith.addf %116, %119 : vector<8x128xf32>
    %121 = vector.extract_strided_slice %19 {offsets = [0, 18], sizes = [8, 1], strides = [1, 1]} : vector<8x25xf32> to vector<8x1xf32>
    %122 = vector.broadcast %121 : vector<8x1xf32> to vector<8x128xf32>
    %123 = arith.mulf %122, %14 : vector<8x128xf32>
    %124 = arith.addf %120, %123 : vector<8x128xf32>
    %125 = vector.extract_strided_slice %19 {offsets = [0, 19], sizes = [8, 1], strides = [1, 1]} : vector<8x25xf32> to vector<8x1xf32>
    %126 = vector.broadcast %125 : vector<8x1xf32> to vector<8x128xf32>
    %127 = arith.mulf %126, %17 : vector<8x128xf32>
    %128 = arith.addf %124, %127 : vector<8x128xf32>
    %129 = vector.broadcast %1 : vector<1x128xf32> to vector<8x128xf32>
    %130 = arith.addf %128, %129 : vector<8x128xf32>
    %cst_30 = arith.constant 0.000000e+00 : f32
    %131 = vector.broadcast %cst_30 : f32 to vector<8x128xf32>
    %132 = arith.cmpf oge, %130, %131 : vector<8x128xf32>
    %133 = vector.broadcast %2 : vector<1x128xf32> to vector<8x128xf32>
    %134 = arith.mulf %133, %130 : vector<8x128xf32>
    %135 = arith.select %132, %130, %134 : vector<8x128xi1>, vector<8x128xf32>
    %136 = arith.addf %107, %135 : vector<8x128xf32>
    %cst_31 = arith.constant 0.000000e+00 : f32
    %137 = vector.broadcast %cst_31 : f32 to vector<8x128xf32>
    %138 = vector.extract_strided_slice %19 {offsets = [0, 20], sizes = [8, 1], strides = [1, 1]} : vector<8x25xf32> to vector<8x1xf32>
    %139 = vector.broadcast %138 : vector<8x1xf32> to vector<8x128xf32>
    %140 = arith.mulf %139, %5 : vector<8x128xf32>
    %141 = arith.addf %137, %140 : vector<8x128xf32>
    %142 = vector.extract_strided_slice %19 {offsets = [0, 21], sizes = [8, 1], strides = [1, 1]} : vector<8x25xf32> to vector<8x1xf32>
    %143 = vector.broadcast %142 : vector<8x1xf32> to vector<8x128xf32>
    %144 = arith.mulf %143, %8 : vector<8x128xf32>
    %145 = arith.addf %141, %144 : vector<8x128xf32>
    %146 = vector.extract_strided_slice %19 {offsets = [0, 22], sizes = [8, 1], strides = [1, 1]} : vector<8x25xf32> to vector<8x1xf32>
    %147 = vector.broadcast %146 : vector<8x1xf32> to vector<8x128xf32>
    %148 = arith.mulf %147, %11 : vector<8x128xf32>
    %149 = arith.addf %145, %148 : vector<8x128xf32>
    %150 = vector.extract_strided_slice %19 {offsets = [0, 23], sizes = [8, 1], strides = [1, 1]} : vector<8x25xf32> to vector<8x1xf32>
    %151 = vector.broadcast %150 : vector<8x1xf32> to vector<8x128xf32>
    %152 = arith.mulf %151, %14 : vector<8x128xf32>
    %153 = arith.addf %149, %152 : vector<8x128xf32>
    %154 = vector.extract_strided_slice %19 {offsets = [0, 24], sizes = [8, 1], strides = [1, 1]} : vector<8x25xf32> to vector<8x1xf32>
    %155 = vector.broadcast %154 : vector<8x1xf32> to vector<8x128xf32>
    %156 = arith.mulf %155, %17 : vector<8x128xf32>
    %157 = arith.addf %153, %156 : vector<8x128xf32>
    %158 = vector.broadcast %1 : vector<1x128xf32> to vector<8x128xf32>
    %159 = arith.addf %157, %158 : vector<8x128xf32>
    %cst_32 = arith.constant 0.000000e+00 : f32
    %160 = vector.broadcast %cst_32 : f32 to vector<8x128xf32>
    %161 = arith.cmpf oge, %159, %160 : vector<8x128xf32>
    %162 = vector.broadcast %2 : vector<1x128xf32> to vector<8x128xf32>
    %163 = arith.mulf %162, %159 : vector<8x128xf32>
    %164 = arith.select %161, %159, %163 : vector<8x128xi1>, vector<8x128xf32>
    %cst_33 = arith.constant 2.500000e-01 : f32
    %165 = vector.broadcast %cst_33 : f32 to vector<8x128xf32>
    %166 = arith.mulf %136, %165 : vector<8x128xf32>
    %c64_i32 = arith.constant 64 : i32
    %167 = vector.broadcast %c64_i32 : i32 to vector<8x128xi32>
    %168 = arith.cmpi slt, %18, %167 : vector<8x128xi32>
    %169 = arith.select %168, %166, %135 : vector<8x128xi1>, vector<8x128xf32>
    %c0_34 = arith.constant 0 : index
    %c0_35 = arith.constant 0 : index
    %170 = vector.load %arg3[%c0_34, %c0_35] : memref<8x25xf32, #tpu.memory_space<vmem>>, vector<8x25xf32>
    %cst_36 = arith.constant 0.000000e+00 : f32
    %171 = vector.broadcast %cst_36 : f32 to vector<8x128xf32>
    %cst_37 = arith.constant 0.000000e+00 : f32
    %172 = vector.broadcast %cst_37 : f32 to vector<8x128xf32>
    %173 = vector.extract_strided_slice %170 {offsets = [0, 0], sizes = [8, 1], strides = [1, 1]} : vector<8x25xf32> to vector<8x1xf32>
    %174 = vector.broadcast %173 : vector<8x1xf32> to vector<8x128xf32>
    %175 = arith.mulf %174, %5 : vector<8x128xf32>
    %176 = arith.addf %172, %175 : vector<8x128xf32>
    %177 = vector.extract_strided_slice %170 {offsets = [0, 1], sizes = [8, 1], strides = [1, 1]} : vector<8x25xf32> to vector<8x1xf32>
    %178 = vector.broadcast %177 : vector<8x1xf32> to vector<8x128xf32>
    %179 = arith.mulf %178, %8 : vector<8x128xf32>
    %180 = arith.addf %176, %179 : vector<8x128xf32>
    %181 = vector.extract_strided_slice %170 {offsets = [0, 2], sizes = [8, 1], strides = [1, 1]} : vector<8x25xf32> to vector<8x1xf32>
    %182 = vector.broadcast %181 : vector<8x1xf32> to vector<8x128xf32>
    %183 = arith.mulf %182, %11 : vector<8x128xf32>
    %184 = arith.addf %180, %183 : vector<8x128xf32>
    %185 = vector.extract_strided_slice %170 {offsets = [0, 3], sizes = [8, 1], strides = [1, 1]} : vector<8x25xf32> to vector<8x1xf32>
    %186 = vector.broadcast %185 : vector<8x1xf32> to vector<8x128xf32>
    %187 = arith.mulf %186, %14 : vector<8x128xf32>
    %188 = arith.addf %184, %187 : vector<8x128xf32>
    %189 = vector.extract_strided_slice %170 {offsets = [0, 4], sizes = [8, 1], strides = [1, 1]} : vector<8x25xf32> to vector<8x1xf32>
    %190 = vector.broadcast %189 : vector<8x1xf32> to vector<8x128xf32>
    %191 = arith.mulf %190, %17 : vector<8x128xf32>
    %192 = arith.addf %188, %191 : vector<8x128xf32>
    %193 = vector.broadcast %1 : vector<1x128xf32> to vector<8x128xf32>
    %194 = arith.addf %192, %193 : vector<8x128xf32>
    %cst_38 = arith.constant 0.000000e+00 : f32
    %195 = vector.broadcast %cst_38 : f32 to vector<8x128xf32>
    %196 = arith.cmpf oge, %194, %195 : vector<8x128xf32>
    %197 = vector.broadcast %2 : vector<1x128xf32> to vector<8x128xf32>
    %198 = arith.mulf %197, %194 : vector<8x128xf32>
    %199 = arith.select %196, %194, %198 : vector<8x128xi1>, vector<8x128xf32>
    %200 = arith.addf %171, %199 : vector<8x128xf32>
    %cst_39 = arith.constant 0.000000e+00 : f32
    %201 = vector.broadcast %cst_39 : f32 to vector<8x128xf32>
    %202 = vector.extract_strided_slice %170 {offsets = [0, 5], sizes = [8, 1], strides = [1, 1]} : vector<8x25xf32> to vector<8x1xf32>
    %203 = vector.broadcast %202 : vector<8x1xf32> to vector<8x128xf32>
    %204 = arith.mulf %203, %5 : vector<8x128xf32>
    %205 = arith.addf %201, %204 : vector<8x128xf32>
    %206 = vector.extract_strided_slice %170 {offsets = [0, 6], sizes = [8, 1], strides = [1, 1]} : vector<8x25xf32> to vector<8x1xf32>
    %207 = vector.broadcast %206 : vector<8x1xf32> to vector<8x128xf32>
    %208 = arith.mulf %207, %8 : vector<8x128xf32>
    %209 = arith.addf %205, %208 : vector<8x128xf32>
    %210 = vector.extract_strided_slice %170 {offsets = [0, 7], sizes = [8, 1], strides = [1, 1]} : vector<8x25xf32> to vector<8x1xf32>
    %211 = vector.broadcast %210 : vector<8x1xf32> to vector<8x128xf32>
    %212 = arith.mulf %211, %11 : vector<8x128xf32>
    %213 = arith.addf %209, %212 : vector<8x128xf32>
    %214 = vector.extract_strided_slice %170 {offsets = [0, 8], sizes = [8, 1], strides = [1, 1]} : vector<8x25xf32> to vector<8x1xf32>
    %215 = vector.broadcast %214 : vector<8x1xf32> to vector<8x128xf32>
    %216 = arith.mulf %215, %14 : vector<8x128xf32>
    %217 = arith.addf %213, %216 : vector<8x128xf32>
    %218 = vector.extract_strided_slice %170 {offsets = [0, 9], sizes = [8, 1], strides = [1, 1]} : vector<8x25xf32> to vector<8x1xf32>
    %219 = vector.broadcast %218 : vector<8x1xf32> to vector<8x128xf32>
    %220 = arith.mulf %219, %17 : vector<8x128xf32>
    %221 = arith.addf %217, %220 : vector<8x128xf32>
    %222 = vector.broadcast %1 : vector<1x128xf32> to vector<8x128xf32>
    %223 = arith.addf %221, %222 : vector<8x128xf32>
    %cst_40 = arith.constant 0.000000e+00 : f32
    %224 = vector.broadcast %cst_40 : f32 to vector<8x128xf32>
    %225 = arith.cmpf oge, %223, %224 : vector<8x128xf32>
    %226 = vector.broadcast %2 : vector<1x128xf32> to vector<8x128xf32>
    %227 = arith.mulf %226, %223 : vector<8x128xf32>
    %228 = arith.select %225, %223, %227 : vector<8x128xi1>, vector<8x128xf32>
    %229 = arith.addf %200, %228 : vector<8x128xf32>
    %cst_41 = arith.constant 0.000000e+00 : f32
    %230 = vector.broadcast %cst_41 : f32 to vector<8x128xf32>
    %231 = vector.extract_strided_slice %170 {offsets = [0, 10], sizes = [8, 1], strides = [1, 1]} : vector<8x25xf32> to vector<8x1xf32>
    %232 = vector.broadcast %231 : vector<8x1xf32> to vector<8x128xf32>
    %233 = arith.mulf %232, %5 : vector<8x128xf32>
    %234 = arith.addf %230, %233 : vector<8x128xf32>
    %235 = vector.extract_strided_slice %170 {offsets = [0, 11], sizes = [8, 1], strides = [1, 1]} : vector<8x25xf32> to vector<8x1xf32>
    %236 = vector.broadcast %235 : vector<8x1xf32> to vector<8x128xf32>
    %237 = arith.mulf %236, %8 : vector<8x128xf32>
    %238 = arith.addf %234, %237 : vector<8x128xf32>
    %239 = vector.extract_strided_slice %170 {offsets = [0, 12], sizes = [8, 1], strides = [1, 1]} : vector<8x25xf32> to vector<8x1xf32>
    %240 = vector.broadcast %239 : vector<8x1xf32> to vector<8x128xf32>
    %241 = arith.mulf %240, %11 : vector<8x128xf32>
    %242 = arith.addf %238, %241 : vector<8x128xf32>
    %243 = vector.extract_strided_slice %170 {offsets = [0, 13], sizes = [8, 1], strides = [1, 1]} : vector<8x25xf32> to vector<8x1xf32>
    %244 = vector.broadcast %243 : vector<8x1xf32> to vector<8x128xf32>
    %245 = arith.mulf %244, %14 : vector<8x128xf32>
    %246 = arith.addf %242, %245 : vector<8x128xf32>
    %247 = vector.extract_strided_slice %170 {offsets = [0, 14], sizes = [8, 1], strides = [1, 1]} : vector<8x25xf32> to vector<8x1xf32>
    %248 = vector.broadcast %247 : vector<8x1xf32> to vector<8x128xf32>
    %249 = arith.mulf %248, %17 : vector<8x128xf32>
    %250 = arith.addf %246, %249 : vector<8x128xf32>
    %251 = vector.broadcast %1 : vector<1x128xf32> to vector<8x128xf32>
    %252 = arith.addf %250, %251 : vector<8x128xf32>
    %cst_42 = arith.constant 0.000000e+00 : f32
    %253 = vector.broadcast %cst_42 : f32 to vector<8x128xf32>
    %254 = arith.cmpf oge, %252, %253 : vector<8x128xf32>
    %255 = vector.broadcast %2 : vector<1x128xf32> to vector<8x128xf32>
    %256 = arith.mulf %255, %252 : vector<8x128xf32>
    %257 = arith.select %254, %252, %256 : vector<8x128xi1>, vector<8x128xf32>
    %258 = arith.addf %229, %257 : vector<8x128xf32>
    %cst_43 = arith.constant 0.000000e+00 : f32
    %259 = vector.broadcast %cst_43 : f32 to vector<8x128xf32>
    %260 = vector.extract_strided_slice %170 {offsets = [0, 15], sizes = [8, 1], strides = [1, 1]} : vector<8x25xf32> to vector<8x1xf32>
    %261 = vector.broadcast %260 : vector<8x1xf32> to vector<8x128xf32>
    %262 = arith.mulf %261, %5 : vector<8x128xf32>
    %263 = arith.addf %259, %262 : vector<8x128xf32>
    %264 = vector.extract_strided_slice %170 {offsets = [0, 16], sizes = [8, 1], strides = [1, 1]} : vector<8x25xf32> to vector<8x1xf32>
    %265 = vector.broadcast %264 : vector<8x1xf32> to vector<8x128xf32>
    %266 = arith.mulf %265, %8 : vector<8x128xf32>
    %267 = arith.addf %263, %266 : vector<8x128xf32>
    %268 = vector.extract_strided_slice %170 {offsets = [0, 17], sizes = [8, 1], strides = [1, 1]} : vector<8x25xf32> to vector<8x1xf32>
    %269 = vector.broadcast %268 : vector<8x1xf32> to vector<8x128xf32>
    %270 = arith.mulf %269, %11 : vector<8x128xf32>
    %271 = arith.addf %267, %270 : vector<8x128xf32>
    %272 = vector.extract_strided_slice %170 {offsets = [0, 18], sizes = [8, 1], strides = [1, 1]} : vector<8x25xf32> to vector<8x1xf32>
    %273 = vector.broadcast %272 : vector<8x1xf32> to vector<8x128xf32>
    %274 = arith.mulf %273, %14 : vector<8x128xf32>
    %275 = arith.addf %271, %274 : vector<8x128xf32>
    %276 = vector.extract_strided_slice %170 {offsets = [0, 19], sizes = [8, 1], strides = [1, 1]} : vector<8x25xf32> to vector<8x1xf32>
    %277 = vector.broadcast %276 : vector<8x1xf32> to vector<8x128xf32>
    %278 = arith.mulf %277, %17 : vector<8x128xf32>
    %279 = arith.addf %275, %278 : vector<8x128xf32>
    %280 = vector.broadcast %1 : vector<1x128xf32> to vector<8x128xf32>
    %281 = arith.addf %279, %280 : vector<8x128xf32>
    %cst_44 = arith.constant 0.000000e+00 : f32
    %282 = vector.broadcast %cst_44 : f32 to vector<8x128xf32>
    %283 = arith.cmpf oge, %281, %282 : vector<8x128xf32>
    %284 = vector.broadcast %2 : vector<1x128xf32> to vector<8x128xf32>
    %285 = arith.mulf %284, %281 : vector<8x128xf32>
    %286 = arith.select %283, %281, %285 : vector<8x128xi1>, vector<8x128xf32>
    %287 = arith.addf %258, %286 : vector<8x128xf32>
    %cst_45 = arith.constant 0.000000e+00 : f32
    %288 = vector.broadcast %cst_45 : f32 to vector<8x128xf32>
    %289 = vector.extract_strided_slice %170 {offsets = [0, 20], sizes = [8, 1], strides = [1, 1]} : vector<8x25xf32> to vector<8x1xf32>
    %290 = vector.broadcast %289 : vector<8x1xf32> to vector<8x128xf32>
    %291 = arith.mulf %290, %5 : vector<8x128xf32>
    %292 = arith.addf %288, %291 : vector<8x128xf32>
    %293 = vector.extract_strided_slice %170 {offsets = [0, 21], sizes = [8, 1], strides = [1, 1]} : vector<8x25xf32> to vector<8x1xf32>
    %294 = vector.broadcast %293 : vector<8x1xf32> to vector<8x128xf32>
    %295 = arith.mulf %294, %8 : vector<8x128xf32>
    %296 = arith.addf %292, %295 : vector<8x128xf32>
    %297 = vector.extract_strided_slice %170 {offsets = [0, 22], sizes = [8, 1], strides = [1, 1]} : vector<8x25xf32> to vector<8x1xf32>
    %298 = vector.broadcast %297 : vector<8x1xf32> to vector<8x128xf32>
    %299 = arith.mulf %298, %11 : vector<8x128xf32>
    %300 = arith.addf %296, %299 : vector<8x128xf32>
    %301 = vector.extract_strided_slice %170 {offsets = [0, 23], sizes = [8, 1], strides = [1, 1]} : vector<8x25xf32> to vector<8x1xf32>
    %302 = vector.broadcast %301 : vector<8x1xf32> to vector<8x128xf32>
    %303 = arith.mulf %302, %14 : vector<8x128xf32>
    %304 = arith.addf %300, %303 : vector<8x128xf32>
    %305 = vector.extract_strided_slice %170 {offsets = [0, 24], sizes = [8, 1], strides = [1, 1]} : vector<8x25xf32> to vector<8x1xf32>
    %306 = vector.broadcast %305 : vector<8x1xf32> to vector<8x128xf32>
    %307 = arith.mulf %306, %17 : vector<8x128xf32>
    %308 = arith.addf %304, %307 : vector<8x128xf32>
    %309 = vector.broadcast %1 : vector<1x128xf32> to vector<8x128xf32>
    %310 = arith.addf %308, %309 : vector<8x128xf32>
    %cst_46 = arith.constant 0.000000e+00 : f32
    %311 = vector.broadcast %cst_46 : f32 to vector<8x128xf32>
    %312 = arith.cmpf oge, %310, %311 : vector<8x128xf32>
    %313 = vector.broadcast %2 : vector<1x128xf32> to vector<8x128xf32>
    %314 = arith.mulf %313, %310 : vector<8x128xf32>
    %315 = arith.select %312, %310, %314 : vector<8x128xi1>, vector<8x128xf32>
    %cst_47 = arith.constant 2.500000e-01 : f32
    %316 = vector.broadcast %cst_47 : f32 to vector<8x128xf32>
    %317 = arith.mulf %287, %316 : vector<8x128xf32>
    %c64_i32_48 = arith.constant 64 : i32
    %318 = vector.broadcast %c64_i32_48 : i32 to vector<8x128xi32>
    %319 = arith.cmpi slt, %18, %318 : vector<8x128xi32>
    %320 = arith.select %319, %317, %286 : vector<8x128xi1>, vector<8x128xf32>
    %c0_49 = arith.constant 0 : index
    %c0_50 = arith.constant 0 : index
    %321 = vector.load %arg7[%c0_49, %c0_50] : memref<8x128xf32, #tpu.memory_space<vmem>>, vector<8x128xf32>
    tpu.vector_store %arg7[%c0_49, %c0_50], %164 {strides = array<i32>} : memref<8x128xf32, #tpu.memory_space<vmem>>, vector<8x128xf32>,
    %c0_51 = arith.constant 0 : index
    %c0_52 = arith.constant 0 : index
    %322 = vector.load %arg8[%c0_51, %c0_52] : memref<8x128xf32, #tpu.memory_space<vmem>>, vector<8x128xf32>
    tpu.vector_store %arg8[%c0_51, %c0_52], %169 {strides = array<i32>} : memref<8x128xf32, #tpu.memory_space<vmem>>, vector<8x128xf32>,
    %c0_53 = arith.constant 0 : index
    %c0_54 = arith.constant 0 : index
    %323 = vector.load %arg9[%c0_53, %c0_54] : memref<8x128xf32, #tpu.memory_space<vmem>>, vector<8x128xf32>
    tpu.vector_store %arg9[%c0_53, %c0_54], %315 {strides = array<i32>} : memref<8x128xf32, #tpu.memory_space<vmem>>, vector<8x128xf32>,
    %c0_55 = arith.constant 0 : index
    %c0_56 = arith.constant 0 : index
    %324 = vector.load %arg10[%c0_55, %c0_56] : memref<8x128xf32, #tpu.memory_space<vmem>>, vector<8x128xf32>
    tpu.vector_store %arg10[%c0_55, %c0_56], %320 {strides = array<i32>} : memref<8x128xf32, #tpu.memory_space<vmem>>, vector<8x128xf32>,
    return
  }
  func.func @transform_0(%arg0: i32) -> (i32, i32, i32) {
    %c0_i32 = arith.constant 0 : i32
    %c0_i32_0 = arith.constant 0 : i32
    %c0_i32_1 = arith.constant 0 : i32
    return %c0_i32, %arg0, %c0_i32_0 : i32, i32, i32
  }
  func.func @transform_1(%arg0: i32) -> (i32, i32) {
    %c0_i32 = arith.constant 0 : i32
    %c0_i32_0 = arith.constant 0 : i32
    return %arg0, %c0_i32 : i32, i32
  }
  func.func @transform_2(%arg0: i32) -> (i32, i32) {
    %c0_i32 = arith.constant 0 : i32
    %c0_i32_0 = arith.constant 0 : i32
    return %arg0, %c0_i32 : i32, i32
  }
  func.func @transform_3(%arg0: i32) -> (i32, i32) {
    %c0_i32 = arith.constant 0 : i32
    %c0_i32_0 = arith.constant 0 : i32
    %c0_i32_1 = arith.constant 0 : i32
    return %c0_i32, %c0_i32_0 : i32, i32
  }
  func.func @transform_4(%arg0: i32) -> (i32, i32) {
    %c0_i32 = arith.constant 0 : i32
    %c0_i32_0 = arith.constant 0 : i32
    %c0_i32_1 = arith.constant 0 : i32
    return %c0_i32, %c0_i32_0 : i32, i32
  }
  func.func @transform_5(%arg0: i32) -> (i32, i32) {
    %c0_i32 = arith.constant 0 : i32
    %c0_i32_0 = arith.constant 0 : i32
    %c0_i32_1 = arith.constant 0 : i32
    return %c0_i32, %c0_i32_0 : i32, i32
  }
  func.func @transform_6(%arg0: i32) -> (i32, i32) {
    %c0_i32 = arith.constant 0 : i32
    %c0_i32_0 = arith.constant 0 : i32
    return %arg0, %c0_i32 : i32, i32
  }
  func.func @transform_7(%arg0: i32) -> (i32, i32) {
    %c0_i32 = arith.constant 0 : i32
    %c0_i32_0 = arith.constant 0 : i32
    return %arg0, %c0_i32 : i32, i32
  }
  func.func @transform_8(%arg0: i32) -> (i32, i32) {
    %c0_i32 = arith.constant 0 : i32
    %c0_i32_0 = arith.constant 0 : i32
    return %arg0, %c0_i32 : i32, i32
  }
  func.func @transform_9(%arg0: i32) -> (i32, i32) {
    %c0_i32 = arith.constant 0 : i32
    %c0_i32_0 = arith.constant 0 : i32
    return %arg0, %c0_i32 : i32, i32
  }
}

module attributes {stable_mosaic.version = 11 : i64} {
  func.func @_heads_kernel(%arg0: i32, %arg1: memref<8x128xf32, #tpu.memory_space<vmem>>, %arg2: memref<8x128xf32, #tpu.memory_space<vmem>>, %arg3: memref<8x128xf32, #tpu.memory_space<vmem>>, %arg4: memref<8x128xf32, #tpu.memory_space<vmem>>, %arg5: memref<8x128xf32, #tpu.memory_space<vmem>>, %arg6: memref<8x128xf32, #tpu.memory_space<vmem>>, %arg7: memref<8x128xf32, #tpu.memory_space<vmem>>, %arg8: memref<8x128xf32, #tpu.memory_space<vmem>>, %arg9: memref<128x128xf32, #tpu.memory_space<vmem>>, %arg10: memref<8x8xf32, #tpu.memory_space<vmem>>, %arg11: memref<8x1xf32, #tpu.memory_space<vmem>>) attributes {dimension_semantics = [#tpu.dimension_semantics<parallel>], iteration_bounds = array<i64: 1>, scalar_prefetch = 0 : i64, scratch_operands = 0 : i64, tpu.core_type = #tpu.core_type<tc>, window_params = [{transform_indices = @transform_0, window_bounds = array<i64: 8, 128>}, {transform_indices = @transform_1, window_bounds = array<i64: 8, 128>}, {transform_indices = @transform_2, window_bounds = array<i64: 8, 128>}, {transform_indices = @transform_3, window_bounds = array<i64: 8, 128>}, {transform_indices = @transform_4, window_bounds = array<i64: 8, 128>}, {transform_indices = @transform_5, window_bounds = array<i64: 8, 128>}, {transform_indices = @transform_6, window_bounds = array<i64: 8, 128>}, {transform_indices = @transform_7, window_bounds = array<i64: 8, 128>}, {pipeline_mode = #tpu.pipeline_mode<synchronous>, transform_indices = @transform_8, window_bounds = array<i64: 128, 128>}, {transform_indices = @transform_9, window_bounds = array<i64: 8, 8>}, {transform_indices = @transform_10, window_bounds = array<i64: 8, 1>}]} {
    %c0 = arith.constant 0 : index
    %c0_0 = arith.constant 0 : index
    %0 = vector.load %arg9[%c0, %c0_0] : memref<128x128xf32, #tpu.memory_space<vmem>>, vector<128x128xf32>
    %c0_1 = arith.constant 0 : index
    %c0_2 = arith.constant 0 : index
    %1 = vector.load %arg1[%c0_1, %c0_2] : memref<8x128xf32, #tpu.memory_space<vmem>>, vector<8x128xf32>
    %c0_3 = arith.constant 0 : index
    %c0_4 = arith.constant 0 : index
    %2 = vector.load %arg2[%c0_3, %c0_4] : memref<8x128xf32, #tpu.memory_space<vmem>>, vector<8x128xf32>
    %c0_5 = arith.constant 0 : index
    %c0_6 = arith.constant 0 : index
    %3 = vector.load %arg3[%c0_5, %c0_6] : memref<8x128xf32, #tpu.memory_space<vmem>>, vector<8x128xf32>
    %c0_7 = arith.constant 0 : index
    %c0_8 = arith.constant 0 : index
    %4 = vector.load %arg4[%c0_7, %c0_8] : memref<8x128xf32, #tpu.memory_space<vmem>>, vector<8x128xf32>
    %c0_9 = arith.constant 0 : index
    %c0_10 = arith.constant 0 : index
    %5 = vector.load %arg5[%c0_9, %c0_10] : memref<8x128xf32, #tpu.memory_space<vmem>>, vector<8x128xf32>
    %c0_11 = arith.constant 0 : index
    %c0_12 = arith.constant 0 : index
    %6 = vector.load %arg6[%c0_11, %c0_12] : memref<8x128xf32, #tpu.memory_space<vmem>>, vector<8x128xf32>
    %c0_13 = arith.constant 0 : index
    %c0_14 = arith.constant 0 : index
    %7 = vector.load %arg7[%c0_13, %c0_14] : memref<8x128xf32, #tpu.memory_space<vmem>>, vector<8x128xf32>
    %c0_15 = arith.constant 0 : index
    %c0_16 = arith.constant 0 : index
    %8 = vector.load %arg8[%c0_15, %c0_16] : memref<8x128xf32, #tpu.memory_space<vmem>>, vector<8x128xf32>
    %9 = tpu.iota {dimensions = array<i32: 1>} : vector<8x128xi32>
    %c64_i32 = arith.constant 64 : i32
    %10 = vector.broadcast %c64_i32 : i32 to vector<8x128xi32>
    %11 = arith.cmpi slt, %9, %10 : vector<8x128xi32>
    %cst = arith.constant dense<0.000000e+00> : vector<8x128xf32>
    %12 = tpu.matmul %1, %0, %cst {dimension_numbers = #tpu.dot_dimension_numbers<[1], [0], [0], [1], [0, 0, 1, 1], [], []>} : vector<8x128xf32>, vector<128x128xf32>, vector<8x128xf32> -> vector<8x128xf32>
    %13 = arith.mulf %12, %2 : vector<8x128xf32>
    %14 = arith.mulf %12, %3 : vector<8x128xf32>
    %cst_17 = arith.constant 0.000000e+00 : f32
    %15 = vector.broadcast %cst_17 : f32 to vector<8x128xf32>
    %16 = arith.select %11, %13, %15 : vector<8x128xi1>, vector<8x128xf32>
    %cst_18 = arith.constant dense<0.000000e+00> : vector<8xf32>
    %17 = vector.multi_reduction <add>, %16, %cst_18 [1] : vector<8x128xf32> to vector<8xf32>
    %18 = vector.shape_cast %17 : vector<8xf32> to vector<8x1xf32>
    %cst_19 = arith.constant 0.000000e+00 : f32
    %19 = vector.broadcast %cst_19 : f32 to vector<8x128xf32>
    %20 = arith.select %11, %14, %19 : vector<8x128xi1>, vector<8x128xf32>
    %cst_20 = arith.constant dense<0.000000e+00> : vector<8xf32>
    %21 = vector.multi_reduction <add>, %20, %cst_20 [1] : vector<8x128xf32> to vector<8xf32>
    %22 = vector.shape_cast %21 : vector<8xf32> to vector<8x1xf32>
    %cst_21 = arith.constant 0.000000e+00 : f32
    %23 = vector.broadcast %cst_21 : f32 to vector<8x128xf32>
    %24 = arith.select %11, %23, %13 : vector<8x128xi1>, vector<8x128xf32>
    %cst_22 = arith.constant dense<0.000000e+00> : vector<8xf32>
    %25 = vector.multi_reduction <add>, %24, %cst_22 [1] : vector<8x128xf32> to vector<8xf32>
    %26 = vector.shape_cast %25 : vector<8xf32> to vector<8x1xf32>
    %cst_23 = arith.constant 0.000000e+00 : f32
    %27 = vector.broadcast %cst_23 : f32 to vector<8x128xf32>
    %28 = arith.select %11, %27, %14 : vector<8x128xi1>, vector<8x128xf32>
    %cst_24 = arith.constant dense<0.000000e+00> : vector<8xf32>
    %29 = vector.multi_reduction <add>, %28, %cst_24 [1] : vector<8x128xf32> to vector<8xf32>
    %30 = vector.shape_cast %29 : vector<8xf32> to vector<8x1xf32>
    %cst_25 = arith.constant dense<0.000000e+00> : vector<8x128xf32>
    %31 = tpu.matmul %4, %0, %cst_25 {dimension_numbers = #tpu.dot_dimension_numbers<[1], [0], [0], [1], [0, 0, 1, 1], [], []>} : vector<8x128xf32>, vector<128x128xf32>, vector<8x128xf32> -> vector<8x128xf32>
    %32 = arith.mulf %31, %5 : vector<8x128xf32>
    %33 = arith.mulf %31, %6 : vector<8x128xf32>
    %cst_26 = arith.constant 0.000000e+00 : f32
    %34 = vector.broadcast %cst_26 : f32 to vector<8x128xf32>
    %35 = arith.select %11, %32, %34 : vector<8x128xi1>, vector<8x128xf32>
    %cst_27 = arith.constant dense<0.000000e+00> : vector<8xf32>
    %36 = vector.multi_reduction <add>, %35, %cst_27 [1] : vector<8x128xf32> to vector<8xf32>
    %37 = vector.shape_cast %36 : vector<8xf32> to vector<8x1xf32>
    %cst_28 = arith.constant 0.000000e+00 : f32
    %38 = vector.broadcast %cst_28 : f32 to vector<8x128xf32>
    %39 = arith.select %11, %33, %38 : vector<8x128xi1>, vector<8x128xf32>
    %cst_29 = arith.constant dense<0.000000e+00> : vector<8xf32>
    %40 = vector.multi_reduction <add>, %39, %cst_29 [1] : vector<8x128xf32> to vector<8xf32>
    %41 = vector.shape_cast %40 : vector<8xf32> to vector<8x1xf32>
    %cst_30 = arith.constant 0.000000e+00 : f32
    %42 = vector.broadcast %cst_30 : f32 to vector<8x128xf32>
    %43 = arith.select %11, %42, %32 : vector<8x128xi1>, vector<8x128xf32>
    %cst_31 = arith.constant dense<0.000000e+00> : vector<8xf32>
    %44 = vector.multi_reduction <add>, %43, %cst_31 [1] : vector<8x128xf32> to vector<8xf32>
    %45 = vector.shape_cast %44 : vector<8xf32> to vector<8x1xf32>
    %cst_32 = arith.constant 0.000000e+00 : f32
    %46 = vector.broadcast %cst_32 : f32 to vector<8x128xf32>
    %47 = arith.select %11, %46, %33 : vector<8x128xi1>, vector<8x128xf32>
    %cst_33 = arith.constant dense<0.000000e+00> : vector<8xf32>
    %48 = vector.multi_reduction <add>, %47, %cst_33 [1] : vector<8x128xf32> to vector<8xf32>
    %49 = vector.shape_cast %48 : vector<8xf32> to vector<8x1xf32>
    %50 = tpu.concatenate %18, %22, %26, %30, %37, %41, %45, %49 in 1 : vector<8x1xf32>, vector<8x1xf32>, vector<8x1xf32>, vector<8x1xf32>, vector<8x1xf32>, vector<8x1xf32>, vector<8x1xf32>, vector<8x1xf32> -> vector<8x8xf32>
    %c0_34 = arith.constant 0 : index
    %c0_35 = arith.constant 0 : index
    %51 = vector.load %arg10[%c0_34, %c0_35] : memref<8x8xf32, #tpu.memory_space<vmem>>, vector<8x8xf32>
    tpu.vector_store %arg10[%c0_34, %c0_35], %50 {strides = array<i32>} : memref<8x8xf32, #tpu.memory_space<vmem>>, vector<8x8xf32>,
    %cst_36 = arith.constant 0.000000e+00 : f32
    %52 = vector.broadcast %cst_36 : f32 to vector<8x128xf32>
    %53 = arith.select %11, %2, %52 : vector<8x128xi1>, vector<8x128xf32>
    %54 = arith.mulf %53, %53 : vector<8x128xf32>
    %cst_37 = arith.constant dense<0.000000e+00> : vector<8xf32>
    %55 = vector.multi_reduction <add>, %54, %cst_37 [1] : vector<8x128xf32> to vector<8xf32>
    %56 = vector.shape_cast %55 : vector<8xf32> to vector<8x1xf32>
    %57 = math.sqrt %56 : vector<8x1xf32>
    %cst_38 = arith.constant 9.99999996E-13 : f32
    %58 = vector.broadcast %cst_38 : f32 to vector<8x1xf32>
    %59 = arith.maximumf %57, %58 : vector<8x1xf32>
    %60 = vector.broadcast %59 : vector<8x1xf32> to vector<8x128xf32>
    %61 = arith.divf %53, %60 : vector<8x128xf32>
    %cst_39 = arith.constant 0.000000e+00 : f32
    %62 = vector.broadcast %cst_39 : f32 to vector<8x128xf32>
    %63 = arith.select %11, %5, %62 : vector<8x128xi1>, vector<8x128xf32>
    %64 = arith.mulf %63, %63 : vector<8x128xf32>
    %cst_40 = arith.constant dense<0.000000e+00> : vector<8xf32>
    %65 = vector.multi_reduction <add>, %64, %cst_40 [1] : vector<8x128xf32> to vector<8xf32>
    %66 = vector.shape_cast %65 : vector<8xf32> to vector<8x1xf32>
    %67 = math.sqrt %66 : vector<8x1xf32>
    %cst_41 = arith.constant 9.99999996E-13 : f32
    %68 = vector.broadcast %cst_41 : f32 to vector<8x1xf32>
    %69 = arith.maximumf %67, %68 : vector<8x1xf32>
    %70 = vector.broadcast %69 : vector<8x1xf32> to vector<8x128xf32>
    %71 = arith.divf %63, %70 : vector<8x128xf32>
    %cst_42 = arith.constant 0.000000e+00 : f32
    %72 = vector.broadcast %cst_42 : f32 to vector<8x128xf32>
    %73 = arith.select %11, %7, %72 : vector<8x128xi1>, vector<8x128xf32>
    %74 = arith.mulf %73, %73 : vector<8x128xf32>
    %cst_43 = arith.constant dense<0.000000e+00> : vector<8xf32>
    %75 = vector.multi_reduction <add>, %74, %cst_43 [1] : vector<8x128xf32> to vector<8xf32>
    %76 = vector.shape_cast %75 : vector<8xf32> to vector<8x1xf32>
    %77 = math.sqrt %76 : vector<8x1xf32>
    %cst_44 = arith.constant 9.99999996E-13 : f32
    %78 = vector.broadcast %cst_44 : f32 to vector<8x1xf32>
    %79 = arith.maximumf %77, %78 : vector<8x1xf32>
    %80 = vector.broadcast %79 : vector<8x1xf32> to vector<8x128xf32>
    %81 = arith.divf %73, %80 : vector<8x128xf32>
    %cst_45 = arith.constant 0.000000e+00 : f32
    %82 = vector.broadcast %cst_45 : f32 to vector<8x128xf32>
    %83 = arith.select %11, %8, %82 : vector<8x128xi1>, vector<8x128xf32>
    %84 = arith.mulf %83, %83 : vector<8x128xf32>
    %cst_46 = arith.constant dense<0.000000e+00> : vector<8xf32>
    %85 = vector.multi_reduction <add>, %84, %cst_46 [1] : vector<8x128xf32> to vector<8xf32>
    %86 = vector.shape_cast %85 : vector<8xf32> to vector<8x1xf32>
    %87 = math.sqrt %86 : vector<8x1xf32>
    %cst_47 = arith.constant 9.99999996E-13 : f32
    %88 = vector.broadcast %cst_47 : f32 to vector<8x1xf32>
    %89 = arith.maximumf %87, %88 : vector<8x1xf32>
    %90 = vector.broadcast %89 : vector<8x1xf32> to vector<8x128xf32>
    %91 = arith.divf %83, %90 : vector<8x128xf32>
    %92 = arith.mulf %61, %71 : vector<8x128xf32>
    %cst_48 = arith.constant dense<0.000000e+00> : vector<8xf32>
    %93 = vector.multi_reduction <add>, %92, %cst_48 [1] : vector<8x128xf32> to vector<8xf32>
    %94 = vector.shape_cast %93 : vector<8xf32> to vector<8x1xf32>
    %95 = arith.mulf %61, %91 : vector<8x128xf32>
    %cst_49 = arith.constant dense<0.000000e+00> : vector<8xf32>
    %96 = vector.multi_reduction <add>, %95, %cst_49 [1] : vector<8x128xf32> to vector<8xf32>
    %97 = vector.shape_cast %96 : vector<8xf32> to vector<8x1xf32>
    %98 = arith.mulf %61, %81 : vector<8x128xf32>
    %cst_50 = arith.constant dense<0.000000e+00> : vector<8xf32>
    %99 = vector.multi_reduction <add>, %98, %cst_50 [1] : vector<8x128xf32> to vector<8xf32>
    %100 = vector.shape_cast %99 : vector<8xf32> to vector<8x1xf32>
    %101 = arith.mulf %71, %91 : vector<8x128xf32>
    %cst_51 = arith.constant dense<0.000000e+00> : vector<8xf32>
    %102 = vector.multi_reduction <add>, %101, %cst_51 [1] : vector<8x128xf32> to vector<8xf32>
    %103 = vector.shape_cast %102 : vector<8xf32> to vector<8x1xf32>
    %104 = math.exp %94 : vector<8x1xf32>
    %105 = math.exp %97 : vector<8x1xf32>
    %106 = math.exp %100 : vector<8x1xf32>
    %107 = arith.addf %105, %106 : vector<8x1xf32>
    %108 = math.exp %103 : vector<8x1xf32>
    %109 = arith.addf %107, %108 : vector<8x1xf32>
    %110 = arith.divf %104, %109 : vector<8x1xf32>
    %111 = math.log %110 : vector<8x1xf32>
    %cst_52 = arith.constant 0.000000e+00 : f32
    %112 = vector.broadcast %cst_52 : f32 to vector<8x1xf32>
    %113 = arith.subf %112, %111 : vector<8x1xf32>
    %c0_53 = arith.constant 0 : index
    %c0_54 = arith.constant 0 : index
    %114 = vector.load %arg11[%c0_53, %c0_54] : memref<8x1xf32, #tpu.memory_space<vmem>>, vector<8x1xf32>
    tpu.vector_store %arg11[%c0_53, %c0_54], %113 {strides = array<i32>} : memref<8x1xf32, #tpu.memory_space<vmem>>, vector<8x1xf32>,
    return
  }
  func.func @transform_0(%arg0: i32) -> (i32, i32) {
    %c0_i32 = arith.constant 0 : i32
    %c0_i32_0 = arith.constant 0 : i32
    return %arg0, %c0_i32 : i32, i32
  }
  func.func @transform_1(%arg0: i32) -> (i32, i32) {
    %c0_i32 = arith.constant 0 : i32
    %c0_i32_0 = arith.constant 0 : i32
    return %arg0, %c0_i32 : i32, i32
  }
  func.func @transform_2(%arg0: i32) -> (i32, i32) {
    %c0_i32 = arith.constant 0 : i32
    %c0_i32_0 = arith.constant 0 : i32
    return %arg0, %c0_i32 : i32, i32
  }
  func.func @transform_3(%arg0: i32) -> (i32, i32) {
    %c0_i32 = arith.constant 0 : i32
    %c0_i32_0 = arith.constant 0 : i32
    return %arg0, %c0_i32 : i32, i32
  }
  func.func @transform_4(%arg0: i32) -> (i32, i32) {
    %c0_i32 = arith.constant 0 : i32
    %c0_i32_0 = arith.constant 0 : i32
    return %arg0, %c0_i32 : i32, i32
  }
  func.func @transform_5(%arg0: i32) -> (i32, i32) {
    %c0_i32 = arith.constant 0 : i32
    %c0_i32_0 = arith.constant 0 : i32
    return %arg0, %c0_i32 : i32, i32
  }
  func.func @transform_6(%arg0: i32) -> (i32, i32) {
    %c0_i32 = arith.constant 0 : i32
    %c0_i32_0 = arith.constant 0 : i32
    return %arg0, %c0_i32 : i32, i32
  }
  func.func @transform_7(%arg0: i32) -> (i32, i32) {
    %c0_i32 = arith.constant 0 : i32
    %c0_i32_0 = arith.constant 0 : i32
    return %arg0, %c0_i32 : i32, i32
  }
  func.func @transform_8(%arg0: i32) -> (i32, i32) {
    %c0_i32 = arith.constant 0 : i32
    %c0_i32_0 = arith.constant 0 : i32
    %c0_i32_1 = arith.constant 0 : i32
    return %c0_i32, %c0_i32_0 : i32, i32
  }
  func.func @transform_9(%arg0: i32) -> (i32, i32) {
    %c0_i32 = arith.constant 0 : i32
    %c0_i32_0 = arith.constant 0 : i32
    return %arg0, %c0_i32 : i32, i32
  }
  func.func @transform_10(%arg0: i32) -> (i32, i32) {
    %c0_i32 = arith.constant 0 : i32
    %c0_i32_0 = arith.constant 0 : i32
    return %arg0, %c0_i32 : i32, i32
  }
}

</mosaic_0001>

<llo_original>
// kernel: gradate_forward.3
$region0: #{gradate_forward.3}
  #allocation0 [shape = 'u32[]', space=smem, size = 0x4, offset = 0x4, fixed_abs, tag = 'smem constant byte address 0x4 - core index']
  #allocation1 [shape = 'u32[144,128]{1,0:T(1,128)}', space=vmem, size = 0x12000, scoped, tag = 'internal scratch']
  %s0 = inlined_call_operand.vmem [shape: f32[8,128], index: 0, kind: input, shape index: {}]
  %s1 = inlined_call_operand.vmem [shape: f32[8,128], index: 1, kind: input, shape index: {}]
  %s2 = inlined_call_operand.vmem [shape: f32[8,128], index: 2, kind: input, shape index: {}]
  %s3 = inlined_call_operand.vmem [shape: f32[8,128], index: 3, kind: input, shape index: {}]
  %s4 = inlined_call_operand.vmem [shape: f32[8,128], index: 4, kind: input, shape index: {}]
  %s5 = inlined_call_operand.vmem [shape: f32[8,128], index: 5, kind: input, shape index: {}]
  %s6 = inlined_call_operand.vmem [shape: f32[8,128], index: 6, kind: input, shape index: {}]
  %s7 = inlined_call_operand.vmem [shape: f32[8,128], index: 7, kind: input, shape index: {}]
  %s8 = inlined_call_operand.vmem [shape: f32[128,128], index: 8, kind: input, shape index: {}]
  %s9 = inlined_call_operand.vmem [shape: f32[8,8], index: 9, kind: output, shape index: {0}]
  %s10 = inlined_call_operand.vmem [shape: f32[8,1], index: 10, kind: output, shape index: {1}]
  %11 = xla_tuple %s9, %s10
  %s12 = sld [smem:[#allocation0]]
  $region54: #{gradate_forward.3} parent=0
    _
  %s14 = ssub.s32 1, %s12
  %s15 = scalar_select 0, %s14, %s12
  // Predicated region
  $region2: #{gradate_forward.3} parent=0 // pred_check
    _
  $region3: #{gradate_forward.3} parent=0 // pred_check_branch
    %17 = sbr.rel (0) target = $region5
  $region4: #{gradate_forward.3} parent=0 // pred_region
    _
  $region5: #{gradate_forward.3} parent=0 // pred_fallthru
    _
  // Predicated region
  $region6: #{gradate_forward.3} parent=0 // pred_check
    _
  $region7: #{gradate_forward.3} parent=0 // pred_check_branch
    %19 = sbr.rel (0) target = $region9
  $region8: #{gradate_forward.3} parent=0 // pred_region
    _
  $region9: #{gradate_forward.3} parent=0 // pred_fallthru
    _
  // Predicated region
  $region10: #{gradate_forward.3} parent=0 // pred_check
    _
  $region11: #{gradate_forward.3} parent=0 // pred_check_branch
    %21 = sbr.rel (0) target = $region13
  $region12: #{gradate_forward.3} parent=0 // pred_region
    _
  $region13: #{gradate_forward.3} parent=0 // pred_fallthru
    _
  // Predicated region
  $region14: #{gradate_forward.3} parent=0 // pred_check
    _
  $region15: #{gradate_forward.3} parent=0 // pred_check_branch
    %23 = sbr.rel (0) target = $region17
  $region16: #{gradate_forward.3} parent=0 // pred_region
    _
  $region17: #{gradate_forward.3} parent=0 // pred_fallthru
    _
  // Predicated region
  $region18: #{gradate_forward.3} parent=0 // pred_check
    _
  $region19: #{gradate_forward.3} parent=0 // pred_check_branch
    %25 = sbr.rel (0) target = $region21
  $region20: #{gradate_forward.3} parent=0 // pred_region
    _
  $region21: #{gradate_forward.3} parent=0 // pred_fallthru
    _
  // Predicated region
  $region22: #{gradate_forward.3} parent=0 // pred_check
    _
  $region23: #{gradate_forward.3} parent=0 // pred_check_branch
    %27 = sbr.rel (0) target = $region25
  $region24: #{gradate_forward.3} parent=0 // pred_region
    _
  $region25: #{gradate_forward.3} parent=0 // pred_fallthru
    _
  // Predicated region
  $region26: #{gradate_forward.3} parent=0 // pred_check
    _
  $region27: #{gradate_forward.3} parent=0 // pred_check_branch
    %29 = sbr.rel (0) target = $region29
  $region28: #{gradate_forward.3} parent=0 // pred_region
    _
  $region29: #{gradate_forward.3} parent=0 // pred_fallthru
    _
  // Predicated region
  $region30: #{gradate_forward.3} parent=0 // pred_check
    _
  $region31: #{gradate_forward.3} parent=0 // pred_check_branch
    %31 = sbr.rel (0) target = $region33
  $region32: #{gradate_forward.3} parent=0 // pred_region
    _
  $region33: #{gradate_forward.3} parent=0 // pred_fallthru
    _
  // Predicated region
  $region34: #{gradate_forward.3} parent=0 // pred_check
    _
  $region35: #{gradate_forward.3} parent=0 // pred_check_branch
    %33 = sbr.rel (0) target = $region37
  $region36: #{gradate_forward.3} parent=0 // pred_region
    _
  $region37: #{gradate_forward.3} parent=0 // pred_fallthru
    _
  %v34 = vld [vmem:[%s8] sm:$0xff]
  %v35 = vld [vmem:[%s8 + $0x8] sm:$0xff]
  %v36 = vld [vmem:[%s8 + $0x10] sm:$0xff]
  %v37 = vld [vmem:[%s8 + $0x18] sm:$0xff]
  %v38 = vld [vmem:[%s8 + $0x20] sm:$0xff]
  %v39 = vld [vmem:[%s8 + $0x28] sm:$0xff]
  %v40 = vld [vmem:[%s8 + $0x30] sm:$0xff]
  %v41 = vld [vmem:[%s8 + $0x38] sm:$0xff]
  %v42 = vld [vmem:[%s8 + $0x40] sm:$0xff]
  %v43 = vld [vmem:[%s8 + $0x48] sm:$0xff]
  %v44 = vld [vmem:[%s8 + $0x50] sm:$0xff]
  %v45 = vld [vmem:[%s8 + $0x58] sm:$0xff]
  %v46 = vld [vmem:[%s8 + $0x60] sm:$0xff]
  %v47 = vld [vmem:[%s8 + $0x68] sm:$0xff]
  %v48 = vld [vmem:[%s8 + $0x70] sm:$0xff]
  %v49 = vld [vmem:[%s8 + $0x78] sm:$0xff]
  %v50 = vld [vmem:[%s0] sm:$0xff]
  %v51 = vld [vmem:[%s1] sm:$0xff]
  %v52 = vld [vmem:[%s2] sm:$0xff]
  %v53 = vld [vmem:[%s3] sm:$0xff]
  %v54 = vld [vmem:[%s4] sm:$0xff]
  %v55 = vld [vmem:[%s5] sm:$0xff]
  %v56 = vld [vmem:[%s6] sm:$0xff]
  %v57 = vld [vmem:[%s7] sm:$0xff]
  %v58 = vlaneseq
  %v59 = vand.u32 %v58, 127
  %vm60 = vcmp.lt.s32.totalorder %v59, 64
  %61 = vmatprep.subr.mxu0 0.0
  %62 = vmatpush1.msra.mxu0 %v34
  %63 = vmatprep.subr.mxu0 0.0
  %64 = vmatpush1.msra.mxu0 %v35
  %65 = vmatprep.subr.mxu0 0.0
  %66 = vmatpush1.msra.mxu0 %v36
  %67 = vmatprep.subr.mxu0 0.0
  %68 = vmatpush1.msra.mxu0 %v37
  %69 = vmatprep.subr.mxu0 0.0
  %70 = vmatpush1.msra.mxu0 %v38
  %71 = vmatprep.subr.mxu0 0.0
  %72 = vmatpush1.msra.mxu0 %v39
  %73 = vmatprep.subr.mxu0 0.0
  %74 = vmatpush1.msra.mxu0 %v40
  %75 = vmatprep.subr.mxu0 0.0
  %76 = vmatpush1.msra.mxu0 %v41
  %77 = vmatprep.subr.mxu0 0.0
  %78 = vmatpush1.msra.mxu0 %v42
  %79 = vmatprep.subr.mxu0 0.0
  %80 = vmatpush1.msra.mxu0 %v43
  %81 = vmatprep.subr.mxu0 0.0
  %82 = vmatpush1.msra.mxu0 %v44
  %83 = vmatprep.subr.mxu0 0.0
  %84 = vmatpush1.msra.mxu0 %v45
  %85 = vmatprep.subr.mxu0 0.0
  %86 = vmatpush1.msra.mxu0 %v46
  %87 = vmatprep.subr.mxu0 0.0
  %88 = vmatpush1.msra.mxu0 %v47
  %89 = vmatprep.subr.mxu0 0.0
  %90 = vmatpush1.msra.mxu0 %v48
  %91 = vmatprep.subr.mxu0 0.0
  %92 = vmatpush1.msra.mxu0 %v49
  %93 = vmatprep.subr.mxu0 0.0
  %94 = vmatpush1.msra.mxu0 0.0
  %95 = vmatprep.subr.mxu0 0.0
  %96 = vmatpush1.msra.mxu0 0.0
  %97 = vmatprep.subr.mxu0 0.0
  %98 = vmatpush1.msra.mxu0 0.0
  %99 = vmatprep.subr.mxu0 0.0
  %100 = vmatpush1.msra.mxu0 0.0
  %101 = vmatprep.subr.mxu0 0.0
  %102 = vmatpush1.msra.mxu0 0.0
  %103 = vmatprep.subr.mxu0 0.0
  %104 = vmatpush1.msra.mxu0 0.0
  %105 = vmatprep.subr.mxu0 0.0
  %106 = vmatpush1.msra.mxu0 0.0
  %107 = vmatprep.subr.mxu0 0.0
  %108 = vmatpush1.msra.mxu0 0.0
  %109 = vmatprep.subr.mxu0 0.0
  %110 = vmatpush1.msra.mxu0 0.0
  %111 = vmatprep.subr.mxu0 0.0
  %112 = vmatpush1.msra.mxu0 0.0
  %113 = vmatprep.subr.mxu0 0.0
  %114 = vmatpush1.msra.mxu0 0.0
  %115 = vmatprep.subr.mxu0 0.0
  %116 = vmatpush1.msra.mxu0 0.0
  %117 = vmatprep.subr.mxu0 0.0
  %118 = vmatpush1.msra.mxu0 0.0
  %119 = vmatprep.subr.mxu0 0.0
  %120 = vmatpush1.msra.mxu0 0.0
  %121 = vmatprep.subr.mxu0 0.0
  %122 = vmatpush1.msra.mxu0 0.0
  %123 = vmatprep.subr.mxu0 0.0
  %124 = vmatpush1.msra.mxu0 0.0
  %125 = vmatprep.mubr.f32.mxu0 0.0
  %126 = vmatmul.mubr.f32.gmra.mrb[0].mxu0 %v50
  %v127 = vpop.f32.mrb[0].mxu0
  %v128 = vadd.f32 0.0, %v127
  %v129 = vpop.f32.mrb[0].mxu0
  %130 = vdwg.mxu0
  %v131 = vmul.f32 %v128, %v51
  %v132 = vmul.f32 %v128, %v52
  %v133 = vsel %vm60, %v131, 0.0
  %134 = vadd.xlane.f32.xlu0 %v133
  %v135 = vpop.xlane.xlu0 %134
  %v136 = vsel %vm60, %v132, 0.0
  %137 = vadd.xlane.f32.xlu0 %v136
  %v138 = vpop.xlane.xlu0 %137
  %v139 = vsel %vm60, 0.0, %v131
  %140 = vadd.xlane.f32.xlu0 %v139
  %v141 = vpop.xlane.xlu0 %140
  %v142 = vsel %vm60, 0.0, %v132
  %143 = vadd.xlane.f32.xlu0 %v142
  %v144 = vpop.xlane.xlu0 %143
  %145 = vmatprep.subr.mxu0 0.0
  %146 = vmatpush1.msra.mxu0 %v34
  %147 = vmatprep.subr.mxu0 0.0
  %148 = vmatpush1.msra.mxu0 %v35
  %149 = vmatprep.subr.mxu0 0.0
  %150 = vmatpush1.msra.mxu0 %v36
  %151 = vmatprep.subr.mxu0 0.0
  %152 = vmatpush1.msra.mxu0 %v37
  %153 = vmatprep.subr.mxu0 0.0
  %154 = vmatpush1.msra.mxu0 %v38
  %155 = vmatprep.subr.mxu0 0.0
  %156 = vmatpush1.msra.mxu0 %v39
  %157 = vmatprep.subr.mxu0 0.0
  %158 = vmatpush1.msra.mxu0 %v40
  %159 = vmatprep.subr.mxu0 0.0
  %160 = vmatpush1.msra.mxu0 %v41
  %161 = vmatprep.subr.mxu0 0.0
  %162 = vmatpush1.msra.mxu0 %v42
  %163 = vmatprep.subr.mxu0 0.0
  %164 = vmatpush1.msra.mxu0 %v43
  %165 = vmatprep.subr.mxu0 0.0
  %166 = vmatpush1.msra.mxu0 %v44
  %167 = vmatprep.subr.mxu0 0.0
  %168 = vmatpush1.msra.mxu0 %v45
  %169 = vmatprep.subr.mxu0 0.0
  %170 = vmatpush1.msra.mxu0 %v46
  %171 = vmatprep.subr.mxu0 0.0
  %172 = vmatpush1.msra.mxu0 %v47
  %173 = vmatprep.subr.mxu0 0.0
  %174 = vmatpush1.msra.mxu0 %v48
  %175 = vmatprep.subr.mxu0 0.0
  %176 = vmatpush1.msra.mxu0 %v49
  %177 = vmatprep.subr.mxu0 0.0
  %178 = vmatpush1.msra.mxu0 0.0
  %179 = vmatprep.subr.mxu0 0.0
  %180 = vmatpush1.msra.mxu0 0.0
  %181 = vmatprep.subr.mxu0 0.0
  %182 = vmatpush1.msra.mxu0 0.0
  %183 = vmatprep.subr.mxu0 0.0
  %184 = vmatpush1.msra.mxu0 0.0
  %185 = vmatprep.subr.mxu0 0.0
  %186 = vmatpush1.msra.mxu0 0.0
  %187 = vmatprep.subr.mxu0 0.0
  %188 = vmatpush1.msra.mxu0 0.0
  %189 = vmatprep.subr.mxu0 0.0
  %190 = vmatpush1.msra.mxu0 0.0
  %191 = vmatprep.subr.mxu0 0.0
  %192 = vmatpush1.msra.mxu0 0.0
  %193 = vmatprep.subr.mxu0 0.0
  %194 = vmatpush1.msra.mxu0 0.0
  %195 = vmatprep.subr.mxu0 0.0
  %196 = vmatpush1.msra.mxu0 0.0
  %197 = vmatprep.subr.mxu0 0.0
  %198 = vmatpush1.msra.mxu0 0.0
  %199 = vmatprep.subr.mxu0 0.0
  %200 = vmatpush1.msra.mxu0 0.0
  %201 = vmatprep.subr.mxu0 0.0
  %202 = vmatpush1.msra.mxu0 0.0
  %203 = vmatprep.subr.mxu0 0.0
  %204 = vmatpush1.msra.mxu0 0.0
  %205 = vmatprep.subr.mxu0 0.0
  %206 = vmatpush1.msra.mxu0 0.0
  %207 = vmatprep.subr.mxu0 0.0
  %208 = vmatpush1.msra.mxu0 0.0
  %209 = vmatprep.mubr.f32.mxu0 0.0
  %210 = vmatmul.mubr.f32.gmra.mrb[0].mxu0 %v53
  %v211 = vpop.f32.mrb[0].mxu0
  %v212 = vadd.f32 0.0, %v211
  %v213 = vpop.f32.mrb[0].mxu0
  %214 = vdwg.mxu0
  %v215 = vmul.f32 %v212, %v54
  %v216 = vmul.f32 %v212, %v55
  %v217 = vsel %vm60, %v215, 0.0
  %218 = vadd.xlane.f32.xlu0 %v217
  %v219 = vpop.xlane.xlu0 %218
  %v220 = vsel %vm60, %v216, 0.0
  %221 = vadd.xlane.f32.xlu0 %v220
  %v222 = vpop.xlane.xlu0 %221
  %v223 = vsel %vm60, 0.0, %v215
  %224 = vadd.xlane.f32.xlu0 %v223
  %v225 = vpop.xlane.xlu0 %224
  %v226 = vsel %vm60, 0.0, %v216
  %227 = vadd.xlane.f32.xlu0 %v226
  %v228 = vpop.xlane.xlu0 %227
  %vm229 = vcmask 7168
  %v230 = vsel %vm229, %v135, %v138
  %vm231 = vcmask 15360
  %v232 = vsel %vm231, %v230, %v141
  %vm233 = vcmask 23552
  %v234 = vsel %vm233, %v232, %v144
  %vm235 = vcmask 31744
  %v236 = vsel %vm235, %v234, %v219
  %vm237 = vcmask 39936
  %v238 = vsel %vm237, %v236, %v222
  %vm239 = vcmask 48128
  %v240 = vsel %vm239, %v238, %v225
  %vm241 = vcmask 56320
  %v242 = vsel %vm241, %v240, %v228
  %vm243 = vcmask 64512
  %244 = vst.msk [vmem:[%s9] sm:$0xff] %vm243, %v242
  %v245 = vsel %vm60, %v51, 0.0
  %v246 = vmul.f32 %v245, %v245
  %247 = vadd.xlane.f32.xlu0 %v246
  %v248 = vpop.xlane.xlu0 %247
  %v249 = vrsqrt.pop %v248
  %v250 = vmul.f32 %v248, %v249
  %vm251 = vcmp.eq.f32.partialorder %v248, inf
  %v252 = vsel %vm251, %v248, %v250
  %vm253 = vcmp.eq.f32.partialorder %v248, 0.0
  %v254 = vand.u32 %v248, 2147483648
  %v255 = vsel %vm253, %v254, %v252
  %v256 = vmax.f32 %v255, 1e-12
  %v257 = vrcp.pop %v256
  %v258 = vmul.f32 %v245, %v257
  %v259 = vsel %vm60, %v54, 0.0
  %v260 = vmul.f32 %v259, %v259
  %261 = vadd.xlane.f32.xlu0 %v260
  %v262 = vpop.xlane.xlu0 %261
  %v263 = vrsqrt.pop %v262
  %v264 = vmul.f32 %v262, %v263
  %vm265 = vcmp.eq.f32.partialorder %v262, inf
  %v266 = vsel %vm265, %v262, %v264
  %vm267 = vcmp.eq.f32.partialorder %v262, 0.0
  %v268 = vand.u32 %v262, 2147483648
  %v269 = vsel %vm267, %v268, %v266
  %v270 = vmax.f32 %v269, 1e-12
  %v271 = vrcp.pop %v270
  %v272 = vmul.f32 %v259, %v271
  %v273 = vsel %vm60, %v56, 0.0
  %v274 = vmul.f32 %v273, %v273
  %275 = vadd.xlane.f32.xlu0 %v274
  %v276 = vpop.xlane.xlu0 %275
  %v277 = vrsqrt.pop %v276
  %v278 = vmul.f32 %v276, %v277
  %vm279 = vcmp.eq.f32.partialorder %v276, inf
  %v280 = vsel %vm279, %v276, %v278
  %vm281 = vcmp.eq.f32.partialorder %v276, 0.0
  %v282 = vand.u32 %v276, 2147483648
  %v283 = vsel %vm281, %v282, %v280
  %v284 = vmax.f32 %v283, 1e-12
  %v285 = vrcp.pop %v284
  %v286 = vmul.f32 %v273, %v285
  %v287 = vsel %vm60, %v57, 0.0
  %v288 = vmul.f32 %v287, %v287
  %289 = vadd.xlane.f32.xlu0 %v288
  %v290 = vpop.xlane.xlu0 %289
  %v291 = vrsqrt.pop %v290
  %v292 = vmul.f32 %v290, %v291
  %vm293 = vcmp.eq.f32.partialorder %v290, inf
  %v294 = vsel %vm293, %v290, %v292
  %vm295 = vcmp.eq.f32.partialorder %v290, 0.0
  %v296 = vand.u32 %v290, 2147483648
  %v297 = vsel %vm295, %v296, %v294
  %v298 = vmax.f32 %v297, 1e-12
  %v299 = vrcp.pop %v298
  %v300 = vmul.f32 %v287, %v299
  %v301 = vmul.f32 %v258, %v272
  %302 = vadd.xlane.f32.xlu0 %v301
  %v303 = vpop.xlane.xlu0 %302
  %v304 = vmul.f32 %v258, %v300
  %305 = vadd.xlane.f32.xlu0 %v304
  %v306 = vpop.xlane.xlu0 %305
  %v307 = vmul.f32 %v258, %v286
  %308 = vadd.xlane.f32.xlu0 %v307
  %v309 = vpop.xlane.xlu0 %308
  %v310 = vmul.f32 %v272, %v300
  %311 = vadd.xlane.f32.xlu0 %v310
  %v312 = vpop.xlane.xlu0 %311
  %v313 = vmul.f32 %v303, 1.442695
  %v314 = vpow.pop %v313
  %v315 = vmul.f32 %v306, 1.442695
  %v316 = vpow.pop %v315
  %v317 = vmul.f32 %v309, 1.442695
  %v318 = vpow.pop %v317
  %v319 = vadd.f32 %v316, %v318
  %v320 = vmul.f32 %v312, 1.442695
  %v321 = vpow.pop %v320
  %v322 = vadd.f32 %v319, %v321
  %v323 = vrcp.pop %v322
  %v324 = vmul.f32 %v314, %v323
  %v325 = vlog2.pop %v324
  %v326 = vmul.f32 %v325, 0.6931472
  %v327 = vsub.f32 0.0, %v326
  %328 = vst.msk [vmem:[%s10] sm:$0xff] %vm229, %v327
  // Predicated region
  $region38: #{gradate_forward.3} parent=0 // pred_check
    _
  $region39: #{gradate_forward.3} parent=0 // pred_check_branch
    %330 = sbr.rel (0) target = $region41
  $region40: #{gradate_forward.3} parent=0 // pred_region
    _
  $region41: #{gradate_forward.3} parent=0 // pred_fallthru
    _
  // Predicated region
  $region42: #{gradate_forward.3} parent=0 // pred_check
    _
  $region43: #{gradate_forward.3} parent=0 // pred_check_branch
    %332 = sbr.rel (0) target = $region45
  $region44: #{gradate_forward.3} parent=0 // pred_region
    _
  $region45: #{gradate_forward.3} parent=0 // pred_fallthru
    _
  // Predicated region
  $region46: #{gradate_forward.3} parent=0 // pred_check
    _
  $region47: #{gradate_forward.3} parent=0 // pred_check_branch
    %334 = sbr.rel (0) target = $region49
  $region48: #{gradate_forward.3} parent=0 // pred_region
    _
  $region49: #{gradate_forward.3} parent=0 // pred_fallthru
    _
  // Predicated region
  $region50: #{gradate_forward.3} parent=0 // pred_check
    _
  $region51: #{gradate_forward.3} parent=0 // pred_check_branch
    %336 = sbr.rel (0) target = $region53
  $region52: #{gradate_forward.3} parent=0 // pred_region
    _
  $region53: #{gradate_forward.3} parent=0 // pred_fallthru
    _

// kernel: gradate_forward.2
$region0: #{gradate_forward.2}
  #allocation0 [shape = 'u32[]', space=smem, size = 0x4, offset = 0x4, fixed_abs, tag = 'smem constant byte address 0x4 - core index']
  #allocation1 [shape = 'u32[144,128]{1,0:T(1,128)}', space=vmem, size = 0x12000, scoped, tag = 'internal scratch']
  %s0 = inlined_call_operand.vmem [shape: bf16[5,8,32], index: 0, kind: input, shape index: {}]
  %s1 = inlined_call_operand.vmem [shape: f32[8,25], index: 1, kind: input, shape index: {}]
  %s2 = inlined_call_operand.hbm [shape: f32[8,25], index: 2, kind: input, shape index: {}]
  %s3 = inlined_call_operand.hbm [shape: bf16[32,128], index: 3, kind: input, shape index: {}]
  %s4 = inlined_call_operand.vmem [shape: f32[1,128], index: 4, kind: input, shape index: {}]
  %s5 = inlined_call_operand.vmem [shape: f32[1,128], index: 5, kind: input, shape index: {}]
  %s6 = inlined_call_operand.vmem [shape: f32[8,128], index: 6, kind: output, shape index: {0}]
  %s7 = inlined_call_operand.vmem [shape: f32[8,128], index: 7, kind: output, shape index: {1}]
  %s8 = inlined_call_operand.vmem [shape: f32[8,128], index: 8, kind: output, shape index: {2}]
  %s9 = inlined_call_operand.vmem [shape: f32[8,128], index: 9, kind: output, shape index: {3}]
  %10 = xla_tuple %s6, %s7, %s8, %s9
  %s11 = sld [smem:[#allocation0]]
  $region66: #{gradate_forward.2} parent=0
    _
  %s13 = ssub.s32 1, %s11
  %s14 = scalar_select 0, %s13, %s11
  $region1: #{gradate_forward.2} parent=0
    #allocation2 [shape = 'u8[4096]{0}', space=vmem, size = 0x1000, scoped, tag = 'input window, operand 2, single buffered']
    #allocation3 [shape = 's32[1]{0}', space=sflag, size = 0x4, scoped, tag = 'scoped memory for gradate_forward.2']
    #allocation4 [shape = 'u8[8192]{0}', space=vmem, size = 0x2000, scoped, tag = 'input window, operand 3, single buffered']
    #allocation5 [shape = 's32[1]{0}', space=sflag, size = 0x4, scoped, tag = 'scoped memory for gradate_forward.2']
    %15 = vsyncpa [#allocation3], 0
    %16 = vsyncpa [#allocation5], 0
    // Predicated region
    $region2: #{gradate_forward.2} parent=1 // pred_check
      _
    $region3: #{gradate_forward.2} parent=1 // pred_check_branch
      %18 = sbr.rel (0) target = $region5
    $region4: #{gradate_forward.2} parent=1 // pred_region
      _
    $region5: #{gradate_forward.2} parent=1 // pred_fallthru
      _
    // Predicated region
    $region6: #{gradate_forward.2} parent=1 // pred_check
      _
    $region7: #{gradate_forward.2} parent=1 // pred_check_branch
      %20 = sbr.rel (0) target = $region9
    $region8: #{gradate_forward.2} parent=1 // pred_region
      _
    $region9: #{gradate_forward.2} parent=1 // pred_fallthru
      _
    // Predicated region
    $region10: #{gradate_forward.2} parent=1 // pred_check
      _
    $region11: #{gradate_forward.2} parent=1 // pred_check_branch
      %22 = sbr.rel (0) target = $region13
    $region12: #{gradate_forward.2} parent=1 // pred_region
      %s24 = ssub.s32 128, 128
      %25 = vsyncadd [#allocation3], %s24
      %s27 = sshll.u32 [#allocation2], 4
      %s28 = int_to_ptr.vmem [resolvable:$true] %s27
      %30 = dma.hbm_to_vmem [thread:$0]  %s2, 128, %s28, [#allocation3]
    $region13: #{gradate_forward.2} parent=1 // pred_fallthru
      _
    // Predicated region
    $region14: #{gradate_forward.2} parent=1 // pred_check
      _
    $region15: #{gradate_forward.2} parent=1 // pred_check_branch
      %32 = sbr.rel (0) target = $region17
    $region16: #{gradate_forward.2} parent=1 // pred_region
      %s34 = ssub.s32 256, 256
      %35 = vsyncadd [#allocation5], %s34
      %s36 = sshll.u32 [#allocation4], 4
      %s37 = int_to_ptr.vmem [resolvable:$true] %s36
      %42 = dma.hbm_to_vmem [thread:$0]  %s3, 256, %s37, [#allocation5], 64, 64, 4
    $region17: #{gradate_forward.2} parent=1 // pred_fallthru
      _
    // Predicated region
    $region18: #{gradate_forward.2} parent=1 // pred_check
      _
    $region19: #{gradate_forward.2} parent=1 // pred_check_branch
      %44 = sbr.rel (0) target = $region21
    $region20: #{gradate_forward.2} parent=1 // pred_region
      _
    $region21: #{gradate_forward.2} parent=1 // pred_fallthru
      _
    // Predicated region
    $region22: #{gradate_forward.2} parent=1 // pred_check
      _
    $region23: #{gradate_forward.2} parent=1 // pred_check_branch
      %46 = sbr.rel (0) target = $region25
    $region24: #{gradate_forward.2} parent=1 // pred_region
      _
    $region25: #{gradate_forward.2} parent=1 // pred_fallthru
      _
    // Predicated region
    $region26: #{gradate_forward.2} parent=1 // pred_check
      _
    $region27: #{gradate_forward.2} parent=1 // pred_check_branch
      %48 = sbr.rel (0) target = $region29
    $region28: #{gradate_forward.2} parent=1 // pred_region
      %49 = dma.done [#allocation3], 128
    $region29: #{gradate_forward.2} parent=1 // pred_fallthru
      _
    // Predicated region
    $region30: #{gradate_forward.2} parent=1 // pred_check
      _
    $region31: #{gradate_forward.2} parent=1 // pred_check_branch
      %51 = sbr.rel (0) target = $region33
    $region32: #{gradate_forward.2} parent=1 // pred_region
      %52 = dma.done [#allocation5], 256
    $region33: #{gradate_forward.2} parent=1 // pred_fallthru
      _
    %v54 = vld [vmem:[#allocation4] sm:$0xf]
    %v55 = vld [vmem:[#allocation4 + $0x4] sm:$0xf]
    %v56 = vld [vmem:[#allocation4 + $0x8] sm:$0xf]
    %v57 = vld [vmem:[#allocation4 + $0xc] sm:$0xf]
    %v58 = vld [vmem:[%s4] sm:$0x1]
    %v59 = vld [vmem:[%s5] sm:$0x1]
    %v60 = vld [vmem:[%s0] sm:$0xf]
    %v65 = vunpack.c.l.b16 %v54
    %v66 = vunpack.c.l.b16 %v55
    %v67 = vunpack.c.l.b16 %v56
    %v68 = vunpack.c.l.b16 %v57
    %v69 = vpack.c.b16 %v66, %v65
    %v70 = vpack.c.b16 %v68, %v67
    %vm73 = vcmask 261120
    %v75 = vsel %vm73, %v60, 0
    %77 = vmatprep.subr.bf16.mxu0 0
    %78 = vmatpush1.bf16.msra.mxu0 %v69
    %79 = vmatprep.subr.bf16.mxu0 0
    %80 = vmatpush1.bf16.msra.mxu0 %v70
    %81 = vmatprep.subr.bf16.mxu0 0
    %82 = vmatpush1.bf16.msra.mxu0 0
    %83 = vmatprep.subr.bf16.mxu0 0
    %84 = vmatpush1.bf16.msra.mxu0 0
    %85 = vmatprep.subr.bf16.mxu0 0
    %86 = vmatpush1.bf16.msra.mxu0 0
    %87 = vmatprep.subr.bf16.mxu0 0
    %88 = vmatpush1.bf16.msra.mxu0 0
    %89 = vmatprep.subr.bf16.mxu0 0
    %90 = vmatpush1.bf16.msra.mxu0 0
    %91 = vmatprep.subr.bf16.mxu0 0
    %92 = vmatpush1.bf16.msra.mxu0 0
    %93 = vmatprep.subr.bf16.mxu0 0
    %94 = vmatpush1.bf16.msra.mxu0 0
    %95 = vmatprep.subr.bf16.mxu0 0
    %96 = vmatpush1.bf16.msra.mxu0 0
    %97 = vmatprep.subr.bf16.mxu0 0
    %98 = vmatpush1.bf16.msra.mxu0 0
    %99 = vmatprep.subr.bf16.mxu0 0
    %100 = vmatpush1.bf16.msra.mxu0 0
    %101 = vmatprep.subr.bf16.mxu0 0
    %102 = vmatpush1.bf16.msra.mxu0 0
    %103 = vmatprep.subr.bf16.mxu0 0
    %104 = vmatpush1.bf16.msra.mxu0 0
    %105 = vmatprep.subr.bf16.mxu0 0
    %106 = vmatpush1.bf16.msra.mxu0 0
    %107 = vmatprep.subr.bf16.mxu0 0
    %108 = vmatpush1.bf16.msra.mxu0 0
    %109 = vmatprep.mubr.bf16.mxu0 0
    %110 = vmatmul.mubr.bf16.gmra.mrb[0].mxu0 %v75
    %v111 = vpop.f32.mrb[0].mxu0
    %v112 = vadd.f32 0.0, %v111
    %v113 = vpop.f32.mrb[0].mxu0
    %v114 = vpop.f32.mrb[0].mxu0
    %v115 = vpop.f32.mrb[0].mxu0
    %116 = vdwg.mxu0
    %s117 = scalar_lea.vmem %s0, 4
    %v118 = vld [vmem:[%s117] sm:$0xf]
    %v120 = vsel %vm73, %v118, 0
    %122 = vmatprep.subr.bf16.mxu0 0
    %123 = vmatpush1.bf16.msra.mxu0 %v69
    %124 = vmatprep.subr.bf16.mxu0 0
    %125 = vmatpush1.bf16.msra.mxu0 %v70
    %126 = vmatprep.subr.bf16.mxu0 0
    %127 = vmatpush1.bf16.msra.mxu0 0
    %128 = vmatprep.subr.bf16.mxu0 0
    %129 = vmatpush1.bf16.msra.mxu0 0
    %130 = vmatprep.subr.bf16.mxu0 0
    %131 = vmatpush1.bf16.msra.mxu0 0
    %132 = vmatprep.subr.bf16.mxu0 0
    %133 = vmatpush1.bf16.msra.mxu0 0
    %134 = vmatprep.subr.bf16.mxu0 0
    %135 = vmatpush1.bf16.msra.mxu0 0
    %136 = vmatprep.subr.bf16.mxu0 0
    %137 = vmatpush1.bf16.msra.mxu0 0
    %138 = vmatprep.subr.bf16.mxu0 0
    %139 = vmatpush1.bf16.msra.mxu0 0
    %140 = vmatprep.subr.bf16.mxu0 0
    %141 = vmatpush1.bf16.msra.mxu0 0
    %142 = vmatprep.subr.bf16.mxu0 0
    %143 = vmatpush1.bf16.msra.mxu0 0
    %144 = vmatprep.subr.bf16.mxu0 0
    %145 = vmatpush1.bf16.msra.mxu0 0
    %146 = vmatprep.subr.bf16.mxu0 0
    %147 = vmatpush1.bf16.msra.mxu0 0
    %148 = vmatprep.subr.bf16.mxu0 0
    %149 = vmatpush1.bf16.msra.mxu0 0
    %150 = vmatprep.subr.bf16.mxu0 0
    %151 = vmatpush1.bf16.msra.mxu0 0
    %152 = vmatprep.subr.bf16.mxu0 0
    %153 = vmatpush1.bf16.msra.mxu0 0
    %154 = vmatprep.mubr.bf16.mxu0 0
    %155 = vmatmul.mubr.bf16.gmra.mrb[0].mxu0 %v120
    %v156 = vpop.f32.mrb[0].mxu0
    %v157 = vadd.f32 0.0, %v156
    %v158 = vpop.f32.mrb[0].mxu0
    %v159 = vpop.f32.mrb[0].mxu0
    %v160 = vpop.f32.mrb[0].mxu0
    %161 = vdwg.mxu0
    %s162 = scalar_lea.vmem %s0, 8
    %v163 = vld [vmem:[%s162] sm:$0xf]
    %v165 = vsel %vm73, %v163, 0
    %167 = vmatprep.subr.bf16.mxu0 0
    %168 = vmatpush1.bf16.msra.mxu0 %v69
    %169 = vmatprep.subr.bf16.mxu0 0
    %170 = vmatpush1.bf16.msra.mxu0 %v70
    %171 = vmatprep.subr.bf16.mxu0 0
    %172 = vmatpush1.bf16.msra.mxu0 0
    %173 = vmatprep.subr.bf16.mxu0 0
    %174 = vmatpush1.bf16.msra.mxu0 0
    %175 = vmatprep.subr.bf16.mxu0 0
    %176 = vmatpush1.bf16.msra.mxu0 0
    %177 = vmatprep.subr.bf16.mxu0 0
    %178 = vmatpush1.bf16.msra.mxu0 0
    %179 = vmatprep.subr.bf16.mxu0 0
    %180 = vmatpush1.bf16.msra.mxu0 0
    %181 = vmatprep.subr.bf16.mxu0 0
    %182 = vmatpush1.bf16.msra.mxu0 0
    %183 = vmatprep.subr.bf16.mxu0 0
    %184 = vmatpush1.bf16.msra.mxu0 0
    %185 = vmatprep.subr.bf16.mxu0 0
    %186 = vmatpush1.bf16.msra.mxu0 0
    %187 = vmatprep.subr.bf16.mxu0 0
    %188 = vmatpush1.bf16.msra.mxu0 0
    %189 = vmatprep.subr.bf16.mxu0 0
    %190 = vmatpush1.bf16.msra.mxu0 0
    %191 = vmatprep.subr.bf16.mxu0 0
    %192 = vmatpush1.bf16.msra.mxu0 0
    %193 = vmatprep.subr.bf16.mxu0 0
    %194 = vmatpush1.bf16.msra.mxu0 0
    %195 = vmatprep.subr.bf16.mxu0 0
    %196 = vmatpush1.bf16.msra.mxu0 0
    %197 = vmatprep.subr.bf16.mxu0 0
    %198 = vmatpush1.bf16.msra.mxu0 0
    %199 = vmatprep.mubr.bf16.mxu0 0
    %200 = vmatmul.mubr.bf16.gmra.mrb[0].mxu0 %v165
    %v201 = vpop.f32.mrb[0].mxu0
    %v202 = vadd.f32 0.0, %v201
    %v203 = vpop.f32.mrb[0].mxu0
    %v204 = vpop.f32.mrb[0].mxu0
    %v205 = vpop.f32.mrb[0].mxu0
    %206 = vdwg.mxu0
    %s207 = scalar_lea.vmem %s0, 12
    %v208 = vld [vmem:[%s207] sm:$0xf]
    %v210 = vsel %vm73, %v208, 0
    %212 = vmatprep.subr.bf16.mxu0 0
    %213 = vmatpush1.bf16.msra.mxu0 %v69
    %214 = vmatprep.subr.bf16.mxu0 0
    %215 = vmatpush1.bf16.msra.mxu0 %v70
    %216 = vmatprep.subr.bf16.mxu0 0
    %217 = vmatpush1.bf16.msra.mxu0 0
    %218 = vmatprep.subr.bf16.mxu0 0
    %219 = vmatpush1.bf16.msra.mxu0 0
    %220 = vmatprep.subr.bf16.mxu0 0
    %221 = vmatpush1.bf16.msra.mxu0 0
    %222 = vmatprep.subr.bf16.mxu0 0
    %223 = vmatpush1.bf16.msra.mxu0 0
    %224 = vmatprep.subr.bf16.mxu0 0
    %225 = vmatpush1.bf16.msra.mxu0 0
    %226 = vmatprep.subr.bf16.mxu0 0
    %227 = vmatpush1.bf16.msra.mxu0 0
    %228 = vmatprep.subr.bf16.mxu0 0
    %229 = vmatpush1.bf16.msra.mxu0 0
    %230 = vmatprep.subr.bf16.mxu0 0
    %231 = vmatpush1.bf16.msra.mxu0 0
    %232 = vmatprep.subr.bf16.mxu0 0
    %233 = vmatpush1.bf16.msra.mxu0 0
    %234 = vmatprep.subr.bf16.mxu0 0
    %235 = vmatpush1.bf16.msra.mxu0 0
    %236 = vmatprep.subr.bf16.mxu0 0
    %237 = vmatpush1.bf16.msra.mxu0 0
    %238 = vmatprep.subr.bf16.mxu0 0
    %239 = vmatpush1.bf16.msra.mxu0 0
    %240 = vmatprep.subr.bf16.mxu0 0
    %241 = vmatpush1.bf16.msra.mxu0 0
    %242 = vmatprep.subr.bf16.mxu0 0
    %243 = vmatpush1.bf16.msra.mxu0 0
    %244 = vmatprep.mubr.bf16.mxu0 0
    %245 = vmatmul.mubr.bf16.gmra.mrb[0].mxu0 %v210
    %v246 = vpop.f32.mrb[0].mxu0
    %v247 = vadd.f32 0.0, %v246
    %v248 = vpop.f32.mrb[0].mxu0
    %v249 = vpop.f32.mrb[0].mxu0
    %v250 = vpop.f32.mrb[0].mxu0
    %251 = vdwg.mxu0
    %s252 = scalar_lea.vmem %s0, 16
    %v253 = vld [vmem:[%s252] sm:$0xf]
    %v255 = vsel %vm73, %v253, 0
    %257 = vmatprep.subr.bf16.mxu0 0
    %258 = vmatpush1.bf16.msra.mxu0 %v69
    %259 = vmatprep.subr.bf16.mxu0 0
    %260 = vmatpush1.bf16.msra.mxu0 %v70
    %261 = vmatprep.subr.bf16.mxu0 0
    %262 = vmatpush1.bf16.msra.mxu0 0
    %263 = vmatprep.subr.bf16.mxu0 0
    %264 = vmatpush1.bf16.msra.mxu0 0
    %265 = vmatprep.subr.bf16.mxu0 0
    %266 = vmatpush1.bf16.msra.mxu0 0
    %267 = vmatprep.subr.bf16.mxu0 0
    %268 = vmatpush1.bf16.msra.mxu0 0
    %269 = vmatprep.subr.bf16.mxu0 0
    %270 = vmatpush1.bf16.msra.mxu0 0
    %271 = vmatprep.subr.bf16.mxu0 0
    %272 = vmatpush1.bf16.msra.mxu0 0
    %273 = vmatprep.subr.bf16.mxu0 0
    %274 = vmatpush1.bf16.msra.mxu0 0
    %275 = vmatprep.subr.bf16.mxu0 0
    %276 = vmatpush1.bf16.msra.mxu0 0
    %277 = vmatprep.subr.bf16.mxu0 0
    %278 = vmatpush1.bf16.msra.mxu0 0
    %279 = vmatprep.subr.bf16.mxu0 0
    %280 = vmatpush1.bf16.msra.mxu0 0
    %281 = vmatprep.subr.bf16.mxu0 0
    %282 = vmatpush1.bf16.msra.mxu0 0
    %283 = vmatprep.subr.bf16.mxu0 0
    %284 = vmatpush1.bf16.msra.mxu0 0
    %285 = vmatprep.subr.bf16.mxu0 0
    %286 = vmatpush1.bf16.msra.mxu0 0
    %287 = vmatprep.subr.bf16.mxu0 0
    %288 = vmatpush1.bf16.msra.mxu0 0
    %289 = vmatprep.mubr.bf16.mxu0 0
    %290 = vmatmul.mubr.bf16.gmra.mrb[0].mxu0 %v255
    %v291 = vpop.f32.mrb[0].mxu0
    %v292 = vadd.f32 0.0, %v291
    %v293 = vpop.f32.mrb[0].mxu0
    %v294 = vpop.f32.mrb[0].mxu0
    %v295 = vpop.f32.mrb[0].mxu0
    %296 = vdwg.mxu0
    %v297 = vlaneseq
    %v298 = vand.u32 %v297, 127
    %v299 = vld [vmem:[%s1] sm:$0xff]
    %301 = vset.pattern.permute.xlu0 0
    %302 = vperm.xlu0 %301, %v299
    %v303 = vpop.permute.xlu0 %302
    %v305 = vmul.f32 %v303, %v112
    %v306 = vadd.f32 %v305, 0.0
    %307 = vset.pattern.permute.xlu0 1
    %308 = vperm.xlu0 %307, %v299
    %v309 = vpop.permute.xlu0 %308
    %v311 = vmul.f32 %v309, %v157
    %v312 = vadd.f32 %v306, %v311
    %313 = vset.pattern.permute.xlu0 2
    %314 = vperm.xlu0 %313, %v299
    %v315 = vpop.permute.xlu0 %314
    %v317 = vmul.f32 %v315, %v202
    %v318 = vadd.f32 %v312, %v317
    %319 = vset.pattern.permute.xlu0 3
    %320 = vperm.xlu0 %319, %v299
    %v321 = vpop.permute.xlu0 %320
    %v323 = vmul.f32 %v321, %v247
    %v324 = vadd.f32 %v318, %v323
    %325 = vset.pattern.permute.xlu0 4
    %326 = vperm.xlu0 %325, %v299
    %v327 = vpop.permute.xlu0 %326
    %v329 = vmul.f32 %v327, %v292
    %v330 = vadd.f32 %v324, %v329
    %v332 = vlaneseq
    %v333 = vshrl.u32 %v332, 7
    %v334 = vsub.s32 0, %v333
    %v335 = vrot.slane %v58, %v334
    %v337 = vadd.f32 %v330, %v335
    %vm338 = vcmp.ge.f32.partialorder %v337, 0.0
    %v340 = vlaneseq
    %v341 = vshrl.u32 %v340, 7
    %v342 = vsub.s32 0, %v341
    %v343 = vrot.slane %v59, %v342
    %v345 = vmul.f32 %v343, %v337
    %v346 = vsel %vm338, %v337, %v345
    %v347 = vadd.f32 %v346, 0.0
    %348 = vset.pattern.permute.xlu0 5
    %349 = vperm.xlu0 %348, %v299
    %v350 = vpop.permute.xlu0 %349
    %v352 = vmul.f32 %v350, %v112
    %v353 = vadd.f32 %v352, 0.0
    %354 = vset.pattern.permute.xlu0 6
    %355 = vperm.xlu0 %354, %v299
    %v356 = vpop.permute.xlu0 %355
    %v358 = vmul.f32 %v356, %v157
    %v359 = vadd.f32 %v353, %v358
    %360 = vset.pattern.permute.xlu0 7
    %361 = vperm.xlu0 %360, %v299
    %v362 = vpop.permute.xlu0 %361
    %v364 = vmul.f32 %v362, %v202
    %v365 = vadd.f32 %v359, %v364
    %366 = vset.pattern.permute.xlu0 8
    %367 = vperm.xlu0 %366, %v299
    %v368 = vpop.permute.xlu0 %367
    %v370 = vmul.f32 %v368, %v247
    %v371 = vadd.f32 %v365, %v370
    %372 = vset.pattern.permute.xlu0 9
    %373 = vperm.xlu0 %372, %v299
    %v374 = vpop.permute.xlu0 %373
    %v376 = vmul.f32 %v374, %v292
    %v377 = vadd.f32 %v371, %v376
    %v378 = vadd.f32 %v377, %v335
    %vm379 = vcmp.ge.f32.partialorder %v378, 0.0
    %v380 = vmul.f32 %v343, %v378
    %v381 = vsel %vm379, %v378, %v380
    %v382 = vadd.f32 %v347, %v381
    %383 = vset.pattern.permute.xlu0 10
    %384 = vperm.xlu0 %383, %v299
    %v385 = vpop.permute.xlu0 %384
    %v387 = vmul.f32 %v385, %v112
    %v388 = vadd.f32 %v387, 0.0
    %389 = vset.pattern.permute.xlu0 11
    %390 = vperm.xlu0 %389, %v299
    %v391 = vpop.permute.xlu0 %390
    %v393 = vmul.f32 %v391, %v157
    %v394 = vadd.f32 %v388, %v393
    %395 = vset.pattern.permute.xlu0 12
    %396 = vperm.xlu0 %395, %v299
    %v397 = vpop.permute.xlu0 %396
    %v399 = vmul.f32 %v397, %v202
    %v400 = vadd.f32 %v394, %v399
    %401 = vset.pattern.permute.xlu0 13
    %402 = vperm.xlu0 %401, %v299
    %v403 = vpop.permute.xlu0 %402
    %v405 = vmul.f32 %v403, %v247
    %v406 = vadd.f32 %v400, %v405
    %407 = vset.pattern.permute.xlu0 14
    %408 = vperm.xlu0 %407, %v299
    %v409 = vpop.permute.xlu0 %408
    %v411 = vmul.f32 %v409, %v292
    %v412 = vadd.f32 %v406, %v411
    %v413 = vadd.f32 %v412, %v335
    %vm414 = vcmp.ge.f32.partialorder %v413, 0.0
    %v415 = vmul.f32 %v343, %v413
    %v416 = vsel %vm414, %v413, %v415
    %v417 = vadd.f32 %v382, %v416
    %418 = vset.pattern.permute.xlu0 15
    %419 = vperm.xlu0 %418, %v299
    %v420 = vpop.permute.xlu0 %419
    %v422 = vmul.f32 %v420, %v112
    %v423 = vadd.f32 %v422, 0.0
    %424 = vset.pattern.permute.xlu0 16
    %425 = vperm.xlu0 %424, %v299
    %v426 = vpop.permute.xlu0 %425
    %v428 = vmul.f32 %v426, %v157
    %v429 = vadd.f32 %v423, %v428
    %430 = vset.pattern.permute.xlu0 17
    %431 = vperm.xlu0 %430, %v299
    %v432 = vpop.permute.xlu0 %431
    %v434 = vmul.f32 %v432, %v202
    %v435 = vadd.f32 %v429, %v434
    %436 = vset.pattern.permute.xlu0 18
    %437 = vperm.xlu0 %436, %v299
    %v438 = vpop.permute.xlu0 %437
    %v440 = vmul.f32 %v438, %v247
    %v441 = vadd.f32 %v435, %v440
    %442 = vset.pattern.permute.xlu0 19
    %443 = vperm.xlu0 %442, %v299
    %v444 = vpop.permute.xlu0 %443
    %v446 = vmul.f32 %v444, %v292
    %v447 = vadd.f32 %v441, %v446
    %v448 = vadd.f32 %v447, %v335
    %vm449 = vcmp.ge.f32.partialorder %v448, 0.0
    %v450 = vmul.f32 %v343, %v448
    %v451 = vsel %vm449, %v448, %v450
    %v452 = vadd.f32 %v417, %v451
    %453 = vset.pattern.permute.xlu0 20
    %454 = vperm.xlu0 %453, %v299
    %v455 = vpop.permute.xlu0 %454
    %v457 = vmul.f32 %v455, %v112
    %v458 = vadd.f32 %v457, 0.0
    %459 = vset.pattern.permute.xlu0 21
    %460 = vperm.xlu0 %459, %v299
    %v461 = vpop.permute.xlu0 %460
    %v463 = vmul.f32 %v461, %v157
    %v464 = vadd.f32 %v458, %v463
    %465 = vset.pattern.permute.xlu0 22
    %466 = vperm.xlu0 %465, %v299
    %v467 = vpop.permute.xlu0 %466
    %v469 = vmul.f32 %v467, %v202
    %v470 = vadd.f32 %v464, %v469
    %471 = vset.pattern.permute.xlu0 23
    %472 = vperm.xlu0 %471, %v299
    %v473 = vpop.permute.xlu0 %472
    %v475 = vmul.f32 %v473, %v247
    %v476 = vadd.f32 %v470, %v475
    %477 = vset.pattern.permute.xlu0 24
    %478 = vperm.xlu0 %477, %v299
    %v479 = vpop.permute.xlu0 %478
    %v481 = vmul.f32 %v479, %v292
    %v482 = vadd.f32 %v476, %v481
    %v483 = vadd.f32 %v482, %v335
    %vm484 = vcmp.ge.f32.partialorder %v483, 0.0
    %v485 = vmul.f32 %v343, %v483
    %v486 = vsel %vm484, %v483, %v485
    %v487 = vmul.f32 %v452, 0.25
    %vm488 = vcmp.lt.s32.totalorder %v298, 64
    %v489 = vsel %vm488, %v487, %v451
    %v490 = vld [vmem:[#allocation2] sm:$0xff]
    %492 = vset.pattern.permute.xlu0 0
    %493 = vperm.xlu0 %492, %v490
    %v494 = vpop.permute.xlu0 %493
    %v496 = vmul.f32 %v494, %v112
    %v497 = vadd.f32 %v496, 0.0
    %498 = vset.pattern.permute.xlu0 1
    %499 = vperm.xlu0 %498, %v490
    %v500 = vpop.permute.xlu0 %499
    %v502 = vmul.f32 %v500, %v157
    %v503 = vadd.f32 %v497, %v502
    %504 = vset.pattern.permute.xlu0 2
    %505 = vperm.xlu0 %504, %v490
    %v506 = vpop.permute.xlu0 %505
    %v508 = vmul.f32 %v506, %v202
    %v509 = vadd.f32 %v503, %v508
    %510 = vset.pattern.permute.xlu0 3
    %511 = vperm.xlu0 %510, %v490
    %v512 = vpop.permute.xlu0 %511
    %v514 = vmul.f32 %v512, %v247
    %v515 = vadd.f32 %v509, %v514
    %516 = vset.pattern.permute.xlu0 4
    %517 = vperm.xlu0 %516, %v490
    %v518 = vpop.permute.xlu0 %517
    %v520 = vmul.f32 %v518, %v292
    %v521 = vadd.f32 %v515, %v520
    %v522 = vadd.f32 %v521, %v335
    %vm523 = vcmp.ge.f32.partialorder %v522, 0.0
    %v524 = vmul.f32 %v343, %v522
    %v525 = vsel %vm523, %v522, %v524
    %v526 = vadd.f32 %v525, 0.0
    %527 = vset.pattern.permute.xlu0 5
    %528 = vperm.xlu0 %527, %v490
    %v529 = vpop.permute.xlu0 %528
    %v531 = vmul.f32 %v529, %v112
    %v532 = vadd.f32 %v531, 0.0
    %533 = vset.pattern.permute.xlu0 6
    %534 = vperm.xlu0 %533, %v490
    %v535 = vpop.permute.xlu0 %534
    %v537 = vmul.f32 %v535, %v157
    %v538 = vadd.f32 %v532, %v537
    %539 = vset.pattern.permute.xlu0 7
    %540 = vperm.xlu0 %539, %v490
    %v541 = vpop.permute.xlu0 %540
    %v543 = vmul.f32 %v541, %v202
    %v544 = vadd.f32 %v538, %v543
    %545 = vset.pattern.permute.xlu0 8
    %546 = vperm.xlu0 %545, %v490
    %v547 = vpop.permute.xlu0 %546
    %v549 = vmul.f32 %v547, %v247
    %v550 = vadd.f32 %v544, %v549
    %551 = vset.pattern.permute.xlu0 9
    %552 = vperm.xlu0 %551, %v490
    %v553 = vpop.permute.xlu0 %552
    %v555 = vmul.f32 %v553, %v292
    %v556 = vadd.f32 %v550, %v555
    %v557 = vadd.f32 %v556, %v335
    %vm558 = vcmp.ge.f32.partialorder %v557, 0.0
    %v559 = vmul.f32 %v343, %v557
    %v560 = vsel %vm558, %v557, %v559
    %v561 = vadd.f32 %v526, %v560
    %562 = vset.pattern.permute.xlu0 10
    %563 = vperm.xlu0 %562, %v490
    %v564 = vpop.permute.xlu0 %563
    %v566 = vmul.f32 %v564, %v112
    %v567 = vadd.f32 %v566, 0.0
    %568 = vset.pattern.permute.xlu0 11
    %569 = vperm.xlu0 %568, %v490
    %v570 = vpop.permute.xlu0 %569
    %v572 = vmul.f32 %v570, %v157
    %v573 = vadd.f32 %v567, %v572
    %574 = vset.pattern.permute.xlu0 12
    %575 = vperm.xlu0 %574, %v490
    %v576 = vpop.permute.xlu0 %575
    %v578 = vmul.f32 %v576, %v202
    %v579 = vadd.f32 %v573, %v578
    %580 = vset.pattern.permute.xlu0 13
    %581 = vperm.xlu0 %580, %v490
    %v582 = vpop.permute.xlu0 %581
    %v584 = vmul.f32 %v582, %v247
    %v585 = vadd.f32 %v579, %v584
    %586 = vset.pattern.permute.xlu0 14
    %587 = vperm.xlu0 %586, %v490
    %v588 = vpop.permute.xlu0 %587
    %v590 = vmul.f32 %v588, %v292
    %v591 = vadd.f32 %v585, %v590
    %v592 = vadd.f32 %v591, %v335
    %vm593 = vcmp.ge.f32.partialorder %v592, 0.0
    %v594 = vmul.f32 %v343, %v592
    %v595 = vsel %vm593, %v592, %v594
    %v596 = vadd.f32 %v561, %v595
    %597 = vset.pattern.permute.xlu0 15
    %598 = vperm.xlu0 %597, %v490
    %v599 = vpop.permute.xlu0 %598
    %v601 = vmul.f32 %v599, %v112
    %v602 = vadd.f32 %v601, 0.0
    %603 = vset.pattern.permute.xlu0 16
    %604 = vperm.xlu0 %603, %v490
    %v605 = vpop.permute.xlu0 %604
    %v607 = vmul.f32 %v605, %v157
    %v608 = vadd.f32 %v602, %v607
    %609 = vset.pattern.permute.xlu0 17
    %610 = vperm.xlu0 %609, %v490
    %v611 = vpop.permute.xlu0 %610
    %v613 = vmul.f32 %v611, %v202
    %v614 = vadd.f32 %v608, %v613
    %615 = vset.pattern.permute.xlu0 18
    %616 = vperm.xlu0 %615, %v490
    %v617 = vpop.permute.xlu0 %616
    %v619 = vmul.f32 %v617, %v247
    %v620 = vadd.f32 %v614, %v619
    %621 = vset.pattern.permute.xlu0 19
    %622 = vperm.xlu0 %621, %v490
    %v623 = vpop.permute.xlu0 %622
    %v625 = vmul.f32 %v623, %v292
    %v626 = vadd.f32 %v620, %v625
    %v627 = vadd.f32 %v626, %v335
    %vm628 = vcmp.ge.f32.partialorder %v627, 0.0
    %v629 = vmul.f32 %v343, %v627
    %v630 = vsel %vm628, %v627, %v629
    %v631 = vadd.f32 %v596, %v630
    %632 = vset.pattern.permute.xlu0 20
    %633 = vperm.xlu0 %632, %v490
    %v634 = vpop.permute.xlu0 %633
    %v636 = vmul.f32 %v634, %v112
    %v637 = vadd.f32 %v636, 0.0
    %638 = vset.pattern.permute.xlu0 21
    %639 = vperm.xlu0 %638, %v490
    %v640 = vpop.permute.xlu0 %639
    %v642 = vmul.f32 %v640, %v157
    %v643 = vadd.f32 %v637, %v642
    %644 = vset.pattern.permute.xlu0 22
    %645 = vperm.xlu0 %644, %v490
    %v646 = vpop.permute.xlu0 %645
    %v648 = vmul.f32 %v646, %v202
    %v649 = vadd.f32 %v643, %v648
    %650 = vset.pattern.permute.xlu0 23
    %651 = vperm.xlu0 %650, %v490
    %v652 = vpop.permute.xlu0 %651
    %v654 = vmul.f32 %v652, %v247
    %v655 = vadd.f32 %v649, %v654
    %656 = vset.pattern.permute.xlu0 24
    %657 = vperm.xlu0 %656, %v490
    %v658 = vpop.permute.xlu0 %657
    %v660 = vmul.f32 %v658, %v292
    %v661 = vadd.f32 %v655, %v660
    %v662 = vadd.f32 %v661, %v335
    %vm663 = vcmp.ge.f32.partialorder %v662, 0.0
    %v664 = vmul.f32 %v343, %v662
    %v665 = vsel %vm663, %v662, %v664
    %v666 = vmul.f32 %v631, 0.25
    %v667 = vsel %vm488, %v666, %v630
    %668 = vst [vmem:[%s6] sm:$0xff] %v486
    %669 = vst [vmem:[%s7] sm:$0xff] %v489
    %670 = vst [vmem:[%s8] sm:$0xff] %v665
    %671 = vst [vmem:[%s9] sm:$0xff] %v667
    // Predicated region
    $region34: #{gradate_forward.2} parent=1 // pred_check
      _
    $region35: #{gradate_forward.2} parent=1 // pred_check_branch
      %673 = sbr.rel (0) target = $region37
    $region36: #{gradate_forward.2} parent=1 // pred_region
      _
    $region37: #{gradate_forward.2} parent=1 // pred_fallthru
      _
    // Predicated region
    $region38: #{gradate_forward.2} parent=1 // pred_check
      _
    $region39: #{gradate_forward.2} parent=1 // pred_check_branch
      %675 = sbr.rel (0) target = $region41
    $region40: #{gradate_forward.2} parent=1 // pred_region
      _
    $region41: #{gradate_forward.2} parent=1 // pred_fallthru
      _
    // Predicated region
    $region42: #{gradate_forward.2} parent=1 // pred_check
      _
    $region43: #{gradate_forward.2} parent=1 // pred_check_branch
      %677 = sbr.rel (0) target = $region45
    $region44: #{gradate_forward.2} parent=1 // pred_region
      _
    $region45: #{gradate_forward.2} parent=1 // pred_fallthru
      _
    // Predicated region
    $region46: #{gradate_forward.2} parent=1 // pred_check
      _
    $region47: #{gradate_forward.2} parent=1 // pred_check_branch
      %679 = sbr.rel (0) target = $region49
    $region48: #{gradate_forward.2} parent=1 // pred_region
      _
    $region49: #{gradate_forward.2} parent=1 // pred_fallthru
      _
    // Predicated region
    $region50: #{gradate_forward.2} parent=1 // pred_check
      _
    $region51: #{gradate_forward.2} parent=1 // pred_check_branch
      %681 = sbr.rel (0) target = $region53
    $region52: #{gradate_forward.2} parent=1 // pred_region
      _
    $region53: #{gradate_forward.2} parent=1 // pred_fallthru
      _
    // Predicated region
    $region54: #{gradate_forward.2} parent=1 // pred_check
      _
    $region55: #{gradate_forward.2} parent=1 // pred_check_branch
      %683 = sbr.rel (0) target = $region57
    $region56: #{gradate_forward.2} parent=1 // pred_region
      _
    $region57: #{gradate_forward.2} parent=1 // pred_fallthru
      _
    // Predicated region
    $region58: #{gradate_forward.2} parent=1 // pred_check
      _
    $region59: #{gradate_forward.2} parent=1 // pred_check_branch
      %685 = sbr.rel (0) target = $region61
    $region60: #{gradate_forward.2} parent=1 // pred_region
      _
    $region61: #{gradate_forward.2} parent=1 // pred_fallthru
      _
    // Predicated region
    $region62: #{gradate_forward.2} parent=1 // pred_check
      _
    $region63: #{gradate_forward.2} parent=1 // pred_check_branch
      %687 = sbr.rel (0) target = $region65
    $region64: #{gradate_forward.2} parent=1 // pred_region
      _
    $region65: #{gradate_forward.2} parent=1 // pred_fallthru
      _
    %688 = vsyncpa [#allocation3], 1
    %689 = vsyncpa [#allocation5], 1

</llo_original>
